<compile_context>
chip_gen: v5e
topology: v5e:2x2
jax: 0.10.0
libtpu: 0.0.40
codegen_flags: <defaults>
</compile_context>

<pallas_src>
import functools
import math

import jax
import jax.numpy as jnp
from jax import lax
from jax.experimental import pallas as pl
from jax.experimental.pallas import tpu as pltpu

_LN_EPS = 1e-5  # PyTorch nn.LayerNorm default


@functools.lru_cache(maxsize=None)
def _tpu_budget():
    """(vmem_limit_bytes, max_tile) per TPU generation."""
    vmem_bytes = 64 * 1024 * 1024
    try:
        vmem_bytes = int(pltpu.get_tpu_info().vmem_capacity_bytes)
    except Exception:  # interpret mode / unknown chip -> conservative default
        pass
    if vmem_bytes >= 100 * 1024 * 1024:        # v5e / v6e: 128 MiB VMEM
        return 96 * 1024 * 1024, 512
    return 32 * 1024 * 1024, 256               # v7x: 64 MiB VMEM


# --------------------------------------------------------------------------- helpers

def _layernorm_f32(x, g, b, eps):
    """Two-pass LayerNorm in f32 (matches PyTorch numerics; no cancellation)."""
    x = x.astype(jnp.float32)
    mean = jnp.mean(x, axis=-1, keepdims=True)
    xc = x - mean
    var = jnp.mean(xc * xc, axis=-1, keepdims=True)
    return xc * lax.rsqrt(var + eps) * g.astype(jnp.float32) + b.astype(jnp.float32)


def _softmax_rows(s):
    s = s - jnp.max(s, axis=-1, keepdims=True)
    p = jnp.exp(s)
    # approx recip uses the EUP slot; ~1e-3 rel err vs exact division.
    return p * pl.reciprocal(jnp.sum(p, axis=-1, keepdims=True), approx=True)


# --------------------------------------------------------------------------- attention kernels

def _fused_self_attn_kernel(x_ref, g_ref, b_ref, qw_ref, kw_ref, vw_ref,
                            pw_ref, pb_ref, o_ref, xn_ref, acc_ref, *, eps):
    """One (batch, head) grid step of: x + proj(MHA(norm1(x)))."""
    h = pl.program_id(1)

    @pl.when(h == 0)
    def _():
        x = x_ref[0].astype(jnp.float32)
        xn_ref[...] = _layernorm_f32(x, g_ref[...], b_ref[...], eps)   # LN cached over heads
        acc_ref[...] = x + pb_ref[...].astype(jnp.float32)             # residual + proj bias

    w_dtype = qw_ref.dtype
    xn = xn_ref[...].astype(w_dtype)
    q = jnp.dot(xn, qw_ref[0], preferred_element_type=jnp.float32)      # scale folded into q_w
    k = jnp.dot(xn, kw_ref[0], preferred_element_type=jnp.float32)
    v = jnp.dot(xn, vw_ref[0], preferred_element_type=jnp.float32)

    s = lax.dot_general(q, k, (((1,), (1,)), ((), ())),                 # q @ k^T, no transpose
                        preferred_element_type=jnp.float32)
    p = _softmax_rows(s)
    o_h = jnp.dot(p.astype(w_dtype), v.astype(w_dtype),
                  preferred_element_type=jnp.float32)                   # (N, hd)
    acc_ref[...] += jnp.dot(o_h.astype(pw_ref.dtype), pw_ref[0],
                            preferred_element_type=jnp.float32)         # fused out-proj

    @pl.when(h == pl.num_programs(1) - 1)
    def _():
        o_ref[0] = acc_ref[...].astype(o_ref.dtype)


def _fused_cross_attn_kernel(x_ref, e_ref, g3_ref, b3_ref, g4_ref, b4_ref,
                             qw_ref, kw_ref, vw_ref, pw_ref, pb_ref, o_ref,
                             xn_ref, en_ref, acc_ref, *, eps):
    """One (batch, head) grid step of: x + proj(CrossMHA(norm3(x), norm4(emb)))."""
    h = pl.program_id(1)

    @pl.when(h == 0)
    def _():
        x = x_ref[0].astype(jnp.float32)
        xn_ref[...] = _layernorm_f32(x, g3_ref[...], b3_ref[...], eps)
        en_ref[...] = _layernorm_f32(e_ref[0], g4_ref[...], b4_ref[...], eps)
        acc_ref[...] = x + pb_ref[...].astype(jnp.float32)

    w_dtype = qw_ref.dtype
    q = jnp.dot(xn_ref[...].astype(w_dtype), qw_ref[0],
                preferred_element_type=jnp.float32)                     # scale folded into q_w
    en = en_ref[...].astype(w_dtype)
    k = jnp.dot(en, kw_ref[0], preferred_element_type=jnp.float32)
    v = jnp.dot(en, vw_ref[0], preferred_element_type=jnp.float32)

    s = lax.dot_general(q, k, (((1,), (1,)), ((), ())),
                        preferred_element_type=jnp.float32)
    p = _softmax_rows(s)
    o_h = jnp.dot(p.astype(w_dtype), v.astype(w_dtype),
                  preferred_element_type=jnp.float32)
    acc_ref[...] += jnp.dot(o_h.astype(pw_ref.dtype), pw_ref[0],
                            preferred_element_type=jnp.float32)

    @pl.when(h == pl.num_programs(1) - 1)
    def _():
        o_ref[0] = acc_ref[...].astype(o_ref.dtype)


# --------------------------------------------------------------------------- MLP kernels

def _ln_linear_kernel(x_ref, g_ref, bln_ref, w_ref, b_ref, o_ref, xn_ref, *, act, eps):
    """out = act( LayerNorm(x) @ W + b ); LN is computed once per row tile."""
    @pl.when(pl.program_id(1) == 0)
    def _():
        xn_ref[...] = _layernorm_f32(x_ref[...], g_ref[...], bln_ref[...], eps)

    y = jnp.dot(xn_ref[...].astype(w_ref.dtype), w_ref[...],
                preferred_element_type=jnp.float32)
    y = y + b_ref[...].astype(jnp.float32)
    if act == "gelu":
        # Exact erf GELU (nn.GELU default).
        y = 0.5 * y * (1.0 + lax.erf(y * (1.0 / math.sqrt(2.0))))
    o_ref[...] = y.astype(o_ref.dtype)


def _linear_res_kernel(x_ref, w_ref, b_ref, r_ref, o_ref):
    """out = residual + x @ W + b (single-K-block fast path, no scratch)."""
    y = jnp.dot(x_ref[...], w_ref[...], preferred_element_type=jnp.float32)
    o_ref[...] = (y + b_ref[...].astype(jnp.float32)
                  + r_ref[...].astype(jnp.float32)).astype(o_ref.dtype)


def _linear_res_kernel_ktiled(x_ref, w_ref, b_ref, r_ref, o_ref, acc_ref):
    """out = residual + x @ W + b, K-tiled with an f32 VMEM accumulator."""
    @pl.when(pl.program_id(2) == 0)
    def _():
        acc_ref[...] = jnp.zeros_like(acc_ref)

    acc_ref[...] += jnp.dot(x_ref[...], w_ref[...],
                            preferred_element_type=jnp.float32)

    @pl.when(pl.program_id(2) == pl.num_programs(2) - 1)
    def _():
        o_ref[...] = (acc_ref[...] + b_ref[...].astype(jnp.float32)
                      + r_ref[...].astype(jnp.float32)).astype(o_ref.dtype)


# --------------------------------------------------------------------------- wrappers

def fused_self_attention(x, gamma, beta, q_w, k_w, v_w, proj_w, proj_b, *, eps=_LN_EPS):
    """x + proj(MHA(LN(x))) in one pallas_call.  Weights are head-major (H, C, hd)."""
    B, N, C = x.shape
    H, _, hd = q_w.shape
    vmem_limit, _ = _tpu_budget()
    head_in = pl.BlockSpec((1, C, hd), lambda b, h: (h, 0, 0))
    const1c = pl.BlockSpec((1, C), lambda b, h: (0, 0))
    return pl.pallas_call(
        functools.partial(_fused_self_attn_kernel, eps=eps),
        out_shape=jax.ShapeDtypeStruct((B, N, C), x.dtype),
        grid=(B, H),
        in_specs=[
            pl.BlockSpec((1, N, C), lambda b, h: (b, 0, 0)),    # x (resident across heads)
            const1c, const1c,                                   # norm1 gamma / beta
            head_in, head_in, head_in,                          # q_w, k_w, v_w  (H, C, hd)
            pl.BlockSpec((1, hd, C), lambda b, h: (h, 0, 0)),   # proj_w         (H, hd, C)
            const1c,                                            # proj_b
        ],
        out_specs=pl.BlockSpec((1, N, C), lambda b, h: (b, 0, 0)),
        scratch_shapes=[pltpu.VMEM((N, C), jnp.float32),        # LN(x) cache
                        pltpu.VMEM((N, C), jnp.float32)],       # residual + proj accumulator
        compiler_params=pltpu.CompilerParams(
            dimension_semantics=("parallel", "arbitrary"),
            vmem_limit_bytes=vmem_limit),
    )(x, gamma.reshape(1, C), beta.reshape(1, C),
      q_w, k_w, v_w, proj_w, proj_b.reshape(1, C))


def fused_cross_attention(x, emb, g3, b3, g4, b4, q_w, k_w, v_w, proj_w, proj_b,
                          *, eps=_LN_EPS):
    """x + proj(CrossMHA(LN3(x), LN4(emb))) in one pallas_call."""
    B, N, C = x.shape
    M = emb.shape[1]
    H, _, hd = q_w.shape
    vmem_limit, _ = _tpu_budget()
    head_in = pl.BlockSpec((1, C, hd), lambda b, h: (h, 0, 0))
    const1c = pl.BlockSpec((1, C), lambda b, h: (0, 0))
    return pl.pallas_call(
        functools.partial(_fused_cross_attn_kernel, eps=eps),
        out_shape=jax.ShapeDtypeStruct((B, N, C), x.dtype),
        grid=(B, H),
        in_specs=[
            pl.BlockSpec((1, N, C), lambda b, h: (b, 0, 0)),    # x
            pl.BlockSpec((1, M, C), lambda b, h: (b, 0, 0)),    # emb
            const1c, const1c, const1c, const1c,                 # norm3 g/b, norm4 g/b
            head_in, head_in, head_in,                          # q_w, k_w, v_w
            pl.BlockSpec((1, hd, C), lambda b, h: (h, 0, 0)),   # proj_w
            const1c,                                            # proj_b
        ],
        out_specs=pl.BlockSpec((1, N, C), lambda b, h: (b, 0, 0)),
        scratch_shapes=[pltpu.VMEM((N, C), jnp.float32),        # LN3(x) cache
                        pltpu.VMEM((M, C), jnp.float32),        # LN4(emb) cache
                        pltpu.VMEM((N, C), jnp.float32)],       # residual + proj accumulator
        compiler_params=pltpu.CompilerParams(
            dimension_semantics=("parallel", "arbitrary"),
            vmem_limit_bytes=vmem_limit),
    )(x, emb, g3.reshape(1, C), b3.reshape(1, C), g4.reshape(1, C), b4.reshape(1, C),
      q_w, k_w, v_w, proj_w, proj_b.reshape(1, C))


def ln_linear(x2d, gamma, beta, w, bias, act=None, *, eps=_LN_EPS):
    """Fused LayerNorm + Linear + bias (+GELU); LN cached across output-column tiles."""
    R, Cin = x2d.shape
    Cout = w.shape[1]
    vmem_limit, max_tile = _tpu_budget()
    tm = min(R, max_tile)
    tn = min(Cout, max_tile)
    return pl.pallas_call(
        functools.partial(_ln_linear_kernel, act=act, eps=eps),
        out_shape=jax.ShapeDtypeStruct((R, Cout), x2d.dtype),
        grid=(pl.cdiv(R, tm), pl.cdiv(Cout, tn)),
        in_specs=[
            pl.BlockSpec((tm, Cin), lambda i, j: (i, 0)),
            pl.BlockSpec((1, Cin), lambda i, j: (0, 0)),
            pl.BlockSpec((1, Cin), lambda i, j: (0, 0)),
            pl.BlockSpec((Cin, tn), lambda i, j: (0, j)),
            pl.BlockSpec((1, tn), lambda i, j: (0, j)),
        ],
        out_specs=pl.BlockSpec((tm, tn), lambda i, j: (i, j)),
        scratch_shapes=[pltpu.VMEM((tm, Cin), jnp.float32)],    # LN(x) cache across j
        compiler_params=pltpu.CompilerParams(
            # column axis must be sequential so the j==0 LN cache is valid
            dimension_semantics=("parallel", "arbitrary"),
            vmem_limit_bytes=vmem_limit),
    )(x2d, gamma.reshape(1, Cin), beta.reshape(1, Cin), w, bias.reshape(1, Cout))


def linear_residual(x2d, w, bias, res2d, *, tk_max=512):
    """Fused Linear + bias + residual add.  K-tiled accumulator only when Cin is large."""
    R, Cin = x2d.shape
    Cout = w.shape[1]
    vmem_limit, max_tile = _tpu_budget()
    tm = min(R, max_tile)
    tn = min(Cout, max_tile)
    b2 = bias.reshape(1, Cout)

    if Cin <= tk_max:                       # single K block: no scratch / no init pass
        return pl.pallas_call(
            _linear_res_kernel,
            out_shape=jax.ShapeDtypeStruct((R, Cout), x2d.dtype),
            grid=(pl.cdiv(R, tm), pl.cdiv(Cout, tn)),
            in_specs=[
                pl.BlockSpec((tm, Cin), lambda i, j: (i, 0)),
                pl.BlockSpec((Cin, tn), lambda i, j: (0, j)),
                pl.BlockSpec((1, tn), lambda i, j: (0, j)),
                pl.BlockSpec((tm, tn), lambda i, j: (i, j)),
            ],
            out_specs=pl.BlockSpec((tm, tn), lambda i, j: (i, j)),
            compiler_params=pltpu.CompilerParams(
                dimension_semantics=("parallel", "parallel"),
                vmem_limit_bytes=vmem_limit),
        )(x2d, w, b2, res2d)

    tk = Cin                                # K tile must divide Cin exactly
    for cand in (512, 384, 256, 128):
        if Cin % cand == 0:
            tk = cand
            break
    return pl.pallas_call(
        _linear_res_kernel_ktiled,
        out_shape=jax.ShapeDtypeStruct((R, Cout), x2d.dtype),
        grid=(pl.cdiv(R, tm), pl.cdiv(Cout, tn), Cin // tk),
        in_specs=[
            pl.BlockSpec((tm, tk), lambda i, j, k: (i, k)),
            pl.BlockSpec((tk, tn), lambda i, j, k: (k, j)),
            pl.BlockSpec((1, tn), lambda i, j, k: (0, j)),
            pl.BlockSpec((tm, tn), lambda i, j, k: (i, j)),
        ],
        out_specs=pl.BlockSpec((tm, tn), lambda i, j, k: (i, j)),
        scratch_shapes=[pltpu.VMEM((tm, tn), jnp.float32)],
        compiler_params=pltpu.CompilerParams(
            dimension_semantics=("parallel", "parallel", "arbitrary"),
            vmem_limit_bytes=vmem_limit),
    )(x2d, w, b2, res2d)


# --------------------------------------------------------------------------- module

def block_forward(x, emb, params, num_heads):
    """LN->self-attn->+res, LN->cross-attn->+res, LN->MLP->+res (params pre-prepared)."""
    del num_heads  # head count is carried by the head-major weight shapes
    B, N, C = x.shape

    a = params["attn"]
    x = fused_self_attention(x, params["norm1_g"], params["norm1_b"],
                             a["q_w"], a["k_w"], a["v_w"], a["proj_w"], a["proj_b"])

    if emb is not None:
        c = params["cross"]
        x = fused_cross_attention(x, emb,
                                  params["norm3_g"], params["norm3_b"],
                                  params["norm4_g"], params["norm4_b"],
                                  c["q_w"], c["k_w"], c["v_w"], c["proj_w"], c["proj_b"])

    m = params["mlp"]
    x2 = x.reshape(B * N, C)
    h = ln_linear(x2, params["norm2_g"], params["norm2_b"],
                  m["fc1_w"], m["fc1_b"], act="gelu")
    x2 = linear_residual(h, m["fc2_w"], m["fc2_b"], x2)
    return x2.reshape(B, N, C)


# --------------------------------------------------------------------------- params

def init_params(key, dim, num_heads, mlp_ratio=4.0, dtype=jnp.float32):
    """Standard (in, out)-layout weights mirroring the PyTorch module (qkv_bias=False)."""
    hidden = int(dim * mlp_ratio)
    ks = jax.random.split(key, 8)

    def w(k, cin, cout):
        return (0.02 * jax.random.normal(k, (cin, cout))).astype(dtype)

    zeros = lambda n: jnp.zeros((n,), dtype)
    ones = lambda n: jnp.ones((n,), dtype)

    return {
        "norm1_g": ones(dim), "norm1_b": zeros(dim),
        "norm2_g": ones(dim), "norm2_b": zeros(dim),
        "norm3_g": ones(dim), "norm3_b": zeros(dim),
        "norm4_g": ones(dim), "norm4_b": zeros(dim),
        "attn": {
            "qkv_w": w(ks[0], dim, 3 * dim),
            "proj_w": w(ks[1], dim, dim), "proj_b": zeros(dim),
        },
        "cross": {
            "q_w": w(ks[2], dim, dim), "k_w": w(ks[3], dim, dim), "v_w": w(ks[4], dim, dim),
            "proj_w": w(ks[5], dim, dim), "proj_b": zeros(dim),
        },
        "mlp": {
            "fc1_w": w(ks[6], dim, hidden), "fc1_b": zeros(hidden),
            "fc2_w": w(ks[7], hidden, dim), "fc2_b": zeros(dim),
        },
    }


def prepare_params(params, num_heads):
    """One-time repack: head-major attention weights, 1/sqrt(hd) folded into q weights."""
    C = params["norm1_g"].shape[0]
    hd = C // num_heads
    scale = hd ** (-0.5)

    def split_in(w):    # (C, C) -> (H, C, hd): head-major output columns
        return jnp.transpose(w.reshape(C, num_heads, hd), (1, 0, 2))

    def split_out(w):   # (C, C) -> (H, hd, C): head-major input rows
        return w.reshape(num_heads, hd, C)

    a, c = params["attn"], params["cross"]
    qkv_w = a["qkv_w"]  # (C, 3C) packed [q | k | v]
    qw, kw, vw = qkv_w[:, :C], qkv_w[:, C:2 * C], qkv_w[:, 2 * C:]

    new = dict(params)
    new["attn"] = {
        "q_w": (split_in(qw) * scale).astype(qw.dtype),   # scale folded into q
        "k_w": split_in(kw),
        "v_w": split_in(vw),
        "proj_w": split_out(a["proj_w"]),
        "proj_b": a["proj_b"],
    }
    new["cross"] = {
        "q_w": (split_in(c["q_w"]) * scale).astype(c["q_w"].dtype),
        "k_w": split_in(c["k_w"]),
        "v_w": split_in(c["v_w"]),
        "proj_w": split_out(c["proj_w"]),
        "proj_b": c["proj_b"],
    }
    return new


# --------------------------------------------------------------------------- main

if __name__ == "__main__":
    B, N, M, C, H = 2, 8, 8, 32, 4   # batch, seq, emb-seq, dim, heads
    key = jax.random.PRNGKey(0)
    kx, kemb, kp = jax.random.split(key, 3)

    x = jax.random.normal(kx, (B, N, C), dtype=jnp.float32)
    emb = jax.random.normal(kemb, (B, M, C), dtype=jnp.float32)
    params = prepare_params(init_params(kp, C, H), H)   # one-time repack + scale fold

    fwd = jax.jit(functools.partial(block_forward, num_heads=H))
    out = jax.block_until_ready(fwd(x, emb, params))
    assert out.shape == (B, N, C) and out.dtype == jnp.float32
    assert bool(jnp.all(jnp.isfinite(out)))
    print("KERNEL_OK")
</pallas_src>

<mosaic_0001>
module attributes {stable_mosaic.version = 11 : i64} {
  func.func @_fused_self_attn_kernel(%arg0: i32, %arg1: i32, %arg2: memref<1x8x32xf32, #tpu.memory_space<vmem>>, %arg3: memref<1x32xf32, #tpu.memory_space<vmem>>, %arg4: memref<1x32xf32, #tpu.memory_space<vmem>>, %arg5: memref<1x32x8xf32, #tpu.memory_space<vmem>>, %arg6: memref<1x32x8xf32, #tpu.memory_space<vmem>>, %arg7: memref<1x32x8xf32, #tpu.memory_space<vmem>>, %arg8: memref<1x8x32xf32, #tpu.memory_space<vmem>>, %arg9: memref<1x32xf32, #tpu.memory_space<vmem>>, %arg10: memref<1x8x32xf32, #tpu.memory_space<vmem>>, %arg11: memref<8x32xf32, #tpu.memory_space<vmem>>, %arg12: memref<8x32xf32, #tpu.memory_space<vmem>>) attributes {dimension_semantics = [#tpu.dimension_semantics<parallel>, #tpu.dimension_semantics<arbitrary>], iteration_bounds = array<i64: 2, 4>, scalar_prefetch = 0 : i64, scratch_operands = 2 : i64, tpu.core_type = #tpu.core_type<tc>, window_params = [{transform_indices = @transform_0, window_bounds = array<i64: 1, 8, 32>}, {pipeline_mode = #tpu.pipeline_mode<synchronous>, transform_indices = @transform_1, window_bounds = array<i64: 1, 32>}, {pipeline_mode = #tpu.pipeline_mode<synchronous>, transform_indices = @transform_2, window_bounds = array<i64: 1, 32>}, {transform_indices = @transform_3, window_bounds = array<i64: 1, 32, 8>}, {transform_indices = @transform_4, window_bounds = array<i64: 1, 32, 8>}, {transform_indices = @transform_5, window_bounds = array<i64: 1, 32, 8>}, {transform_indices = @transform_6, window_bounds = array<i64: 1, 8, 32>}, {pipeline_mode = #tpu.pipeline_mode<synchronous>, transform_indices = @transform_7, window_bounds = array<i64: 1, 32>}, {transform_indices = @transform_8, window_bounds = array<i64: 1, 8, 32>}]} {
    %c0_i32 = arith.constant 0 : i32
    %0 = arith.cmpi eq, %arg1, %c0_i32 : i32
    %1 = arith.extui %0 : i1 to i32
    %c0_i32_0 = arith.constant 0 : i32
    %2 = arith.cmpi ne, %1, %c0_i32_0 : i32
    scf.if %2 {
      %c0_26 = arith.constant 0 : index
      %c0_27 = arith.constant 0 : index
      %c0_28 = arith.constant 0 : index
      %34 = vector.load %arg2[%c0_26, %c0_27, %c0_28] : memref<1x8x32xf32, #tpu.memory_space<vmem>>, vector<1x8x32xf32>
      %35 = vector.shape_cast %34 : vector<1x8x32xf32> to vector<8x32xf32>
      %c0_29 = arith.constant 0 : index
      %c0_30 = arith.constant 0 : index
      %36 = vector.load %arg3[%c0_29, %c0_30] : memref<1x32xf32, #tpu.memory_space<vmem>>, vector<1x32xf32>
      %c0_31 = arith.constant 0 : index
      %c0_32 = arith.constant 0 : index
      %37 = vector.load %arg4[%c0_31, %c0_32] : memref<1x32xf32, #tpu.memory_space<vmem>>, vector<1x32xf32>
      %cst_33 = arith.constant dense<0.000000e+00> : vector<8xf32>
      %38 = vector.multi_reduction <add>, %35, %cst_33 [1] : vector<8x32xf32> to vector<8xf32>
      %39 = vector.shape_cast %38 : vector<8xf32> to vector<8x1xf32>
      %cst_34 = arith.constant 3.200000e+01 : f32
      %40 = vector.broadcast %cst_34 : f32 to vector<8x1xf32>
      %41 = arith.divf %39, %40 : vector<8x1xf32>
      %42 = vector.broadcast %41 : vector<8x1xf32> to vector<8x32xf32>
      %43 = arith.subf %35, %42 : vector<8x32xf32>
      %44 = arith.mulf %43, %43 : vector<8x32xf32>
      %cst_35 = arith.constant dense<0.000000e+00> : vector<8xf32>
      %45 = vector.multi_reduction <add>, %44, %cst_35 [1] : vector<8x32xf32> to vector<8xf32>
      %46 = vector.shape_cast %45 : vector<8xf32> to vector<8x1xf32>
      %cst_36 = arith.constant 3.200000e+01 : f32
      %47 = vector.broadcast %cst_36 : f32 to vector<8x1xf32>
      %48 = arith.divf %46, %47 : vector<8x1xf32>
      %cst_37 = arith.constant 9.99999974E-6 : f32
      %49 = vector.broadcast %cst_37 : f32 to vector<8x1xf32>
      %50 = arith.addf %48, %49 : vector<8x1xf32>
      %51 = math.rsqrt %50 : vector<8x1xf32>
      %52 = vector.broadcast %51 : vector<8x1xf32> to vector<8x32xf32>
      %53 = arith.mulf %43, %52 : vector<8x32xf32>
      %54 = vector.broadcast %36 : vector<1x32xf32> to vector<8x32xf32>
      %55 = arith.mulf %53, %54 : vector<8x32xf32>
      %56 = vector.broadcast %37 : vector<1x32xf32> to vector<8x32xf32>
      %57 = arith.addf %55, %56 : vector<8x32xf32>
      %c0_38 = arith.constant 0 : index
      %c0_39 = arith.constant 0 : index
      %58 = vector.load %arg11[%c0_38, %c0_39] : memref<8x32xf32, #tpu.memory_space<vmem>>, vector<8x32xf32>
      tpu.vector_store %arg11[%c0_38, %c0_39], %57 {strides = array<i32>} : memref<8x32xf32, #tpu.memory_space<vmem>>, vector<8x32xf32>,
      %c0_40 = arith.constant 0 : index
      %c0_41 = arith.constant 0 : index
      %59 = vector.load %arg9[%c0_40, %c0_41] : memref<1x32xf32, #tpu.memory_space<vmem>>, vector<1x32xf32>
      %60 = vector.broadcast %59 : vector<1x32xf32> to vector<8x32xf32>
      %61 = arith.addf %35, %60 : vector<8x32xf32>
      %c0_42 = arith.constant 0 : index
      %c0_43 = arith.constant 0 : index
      %62 = vector.load %arg12[%c0_42, %c0_43] : memref<8x32xf32, #tpu.memory_space<vmem>>, vector<8x32xf32>
      tpu.vector_store %arg12[%c0_42, %c0_43], %61 {strides = array<i32>} : memref<8x32xf32, #tpu.memory_space<vmem>>, vector<8x32xf32>,
    } else {
    }
    %c0 = arith.constant 0 : index
    %c0_1 = arith.constant 0 : index
    %3 = vector.load %arg11[%c0, %c0_1] : memref<8x32xf32, #tpu.memory_space<vmem>>, vector<8x32xf32>
    %c0_2 = arith.constant 0 : index
    %c0_3 = arith.constant 0 : index
    %c0_4 = arith.constant 0 : index
    %4 = vector.load %arg5[%c0_2, %c0_3, %c0_4] : memref<1x32x8xf32, #tpu.memory_space<vmem>>, vector<1x32x8xf32>
    %5 = vector.shape_cast %4 : vector<1x32x8xf32> to vector<32x8xf32>
    %cst = arith.constant dense<0.000000e+00> : vector<8x8xf32>
    %6 = tpu.matmul %3, %5, %cst {dimension_numbers = #tpu.dot_dimension_numbers<[1], [0], [0], [1], [0, 0, 1, 1], [], []>} : vector<8x32xf32>, vector<32x8xf32>, vector<8x8xf32> -> vector<8x8xf32>
    %c0_5 = arith.constant 0 : index
    %c0_6 = arith.constant 0 : index
    %c0_7 = arith.constant 0 : index
    %7 = vector.load %arg6[%c0_5, %c0_6, %c0_7] : memref<1x32x8xf32, #tpu.memory_space<vmem>>, vector<1x32x8xf32>
    %8 = vector.shape_cast %7 : vector<1x32x8xf32> to vector<32x8xf32>
    %cst_8 = arith.constant dense<0.000000e+00> : vector<8x8xf32>
    %9 = tpu.matmul %3, %8, %cst_8 {dimension_numbers = #tpu.dot_dimension_numbers<[1], [0], [0], [1], [0, 0, 1, 1], [], []>} : vector<8x32xf32>, vector<32x8xf32>, vector<8x8xf32> -> vector<8x8xf32>
    %c0_9 = arith.constant 0 : index
    %c0_10 = arith.constant 0 : index
    %c0_11 = arith.constant 0 : index
    %10 = vector.load %arg7[%c0_9, %c0_10, %c0_11] : memref<1x32x8xf32, #tpu.memory_space<vmem>>, vector<1x32x8xf32>
    %11 = vector.shape_cast %10 : vector<1x32x8xf32> to vector<32x8xf32>
    %cst_12 = arith.constant dense<0.000000e+00> : vector<8x8xf32>
    %12 = tpu.matmul %3, %11, %cst_12 {dimension_numbers = #tpu.dot_dimension_numbers<[1], [0], [0], [1], [0, 0, 1, 1], [], []>} : vector<8x32xf32>, vector<32x8xf32>, vector<8x8xf32> -> vector<8x8xf32>
    %cst_13 = arith.constant dense<0.000000e+00> : vector<8x8xf32>
    %13 = tpu.matmul %6, %9, %cst_13 {dimension_numbers = #tpu.dot_dimension_numbers<[1], [1], [0], [0], [0, 0, 1, 0], [], []>} : vector<8x8xf32>, vector<8x8xf32>, vector<8x8xf32> -> vector<8x8xf32>
    %cst_14 = arith.constant dense<0xFF800000> : vector<8xf32>
    %14 = vector.multi_reduction <maximumf>, %13, %cst_14 [1] : vector<8x8xf32> to vector<8xf32>
    %15 = vector.shape_cast %14 : vector<8xf32> to vector<8x1xf32>
    %16 = vector.broadcast %15 : vector<8x1xf32> to vector<8x8xf32>
    %17 = arith.subf %13, %16 : vector<8x8xf32>
    %18 = math.exp %17 : vector<8x8xf32>
    %cst_15 = arith.constant dense<0.000000e+00> : vector<8xf32>
    %19 = vector.multi_reduction <add>, %18, %cst_15 [1] : vector<8x8xf32> to vector<8xf32>
    %20 = vector.shape_cast %19 : vector<8xf32> to vector<8x1xf32>
    %21 = tpu.reciprocal %20 {approx = true} : vector<8x1xf32> -> vector<8x1xf32>
    %22 = vector.broadcast %21 : vector<8x1xf32> to vector<8x8xf32>
    %23 = arith.mulf %18, %22 : vector<8x8xf32>
    %cst_16 = arith.constant dense<0.000000e+00> : vector<8x8xf32>
    %24 = tpu.matmul %23, %12, %cst_16 {dimension_numbers = #tpu.dot_dimension_numbers<[1], [0], [0], [1], [0, 0, 1, 1], [], []>} : vector<8x8xf32>, vector<8x8xf32>, vector<8x8xf32> -> vector<8x8xf32>
    %c0_17 = arith.constant 0 : index
    %c0_18 = arith.constant 0 : index
    %25 = vector.load %arg12[%c0_17, %c0_18] : memref<8x32xf32, #tpu.memory_space<vmem>>, vector<8x32xf32>
    %c0_19 = arith.constant 0 : index
    %c0_20 = arith.constant 0 : index
    %c0_21 = arith.constant 0 : index
    %26 = vector.load %arg8[%c0_19, %c0_20, %c0_21] : memref<1x8x32xf32, #tpu.memory_space<vmem>>, vector<1x8x32xf32>
    %27 = vector.shape_cast %26 : vector<1x8x32xf32> to vector<8x32xf32>
    %cst_22 = arith.constant dense<0.000000e+00> : vector<8x32xf32>
    %28 = tpu.matmul %24, %27, %cst_22 {dimension_numbers = #tpu.dot_dimension_numbers<[1], [0], [0], [1], [0, 0, 1, 1], [], []>} : vector<8x8xf32>, vector<8x32xf32>, vector<8x32xf32> -> vector<8x32xf32>
    %29 = arith.addf %25, %28 : vector<8x32xf32>
    %c0_23 = arith.constant 0 : index
    %c0_24 = arith.constant 0 : index
    %30 = vector.load %arg12[%c0_23, %c0_24] : memref<8x32xf32, #tpu.memory_space<vmem>>, vector<8x32xf32>
    tpu.vector_store %arg12[%c0_23, %c0_24], %29 {strides = array<i32>} : memref<8x32xf32, #tpu.memory_space<vmem>>, vector<8x32xf32>,
    %c3_i32 = arith.constant 3 : i32
    %31 = arith.cmpi eq, %arg1, %c3_i32 : i32
    %32 = arith.extui %31 : i1 to i32
    %c0_i32_25 = arith.constant 0 : i32
    %33 = arith.cmpi ne, %32, %c0_i32_25 : i32
    scf.if %33 {
      %c0_26 = arith.constant 0 : index
      %c0_27 = arith.constant 0 : index
      %34 = vector.load %arg12[%c0_26, %c0_27] : memref<8x32xf32, #tpu.memory_space<vmem>>, vector<8x32xf32>
      %c0_28 = arith.constant 0 : index
      %c0_29 = arith.constant 0 : index
      %c0_30 = arith.constant 0 : index
      %35 = vector.load %arg10[%c0_28, %c0_29, %c0_30] : memref<1x8x32xf32, #tpu.memory_space<vmem>>, vector<1x8x32xf32>
      %36 = vector.shape_cast %35 : vector<1x8x32xf32> to vector<8x32xf32>
      %37 = vector.shape_cast %34 : vector<8x32xf32> to vector<1x8x32xf32>
      tpu.vector_store %arg10[%c0_28, %c0_29, %c0_30], %37 {strides = array<i32>} : memref<1x8x32xf32, #tpu.memory_space<vmem>>, vector<1x8x32xf32>,
    } else {
    }
    return
  }
  func.func @transform_0(%arg0: i32, %arg1: i32) -> (i32, i32, i32) {
    %c0_i32 = arith.constant 0 : i32
    %c0_i32_0 = arith.constant 0 : i32
    %c0_i32_1 = arith.constant 0 : i32
    return %arg0, %c0_i32, %c0_i32_0 : i32, i32, i32
  }
  func.func @transform_1(%arg0: i32, %arg1: i32) -> (i32, i32) {
    %c0_i32 = arith.constant 0 : i32
    %c0_i32_0 = arith.constant 0 : i32
    %c0_i32_1 = arith.constant 0 : i32
    return %c0_i32, %c0_i32_0 : i32, i32
  }
  func.func @transform_2(%arg0: i32, %arg1: i32) -> (i32, i32) {
    %c0_i32 = arith.constant 0 : i32
    %c0_i32_0 = arith.constant 0 : i32
    %c0_i32_1 = arith.constant 0 : i32
    return %c0_i32, %c0_i32_0 : i32, i32
  }
  func.func @transform_3(%arg0: i32, %arg1: i32) -> (i32, i32, i32) {
    %c0_i32 = arith.constant 0 : i32
    %c0_i32_0 = arith.constant 0 : i32
    %c0_i32_1 = arith.constant 0 : i32
    return %arg1, %c0_i32, %c0_i32_0 : i32, i32, i32
  }
  func.func @transform_4(%arg0: i32, %arg1: i32) -> (i32, i32, i32) {
    %c0_i32 = arith.constant 0 : i32
    %c0_i32_0 = arith.constant 0 : i32
    %c0_i32_1 = arith.constant 0 : i32
    return %arg1, %c0_i32, %c0_i32_0 : i32, i32, i32
  }
  func.func @transform_5(%arg0: i32, %arg1: i32) -> (i32, i32, i32) {
    %c0_i32 = arith.constant 0 : i32
    %c0_i32_0 = arith.constant 0 : i32
    %c0_i32_1 = arith.constant 0 : i32
    return %arg1, %c0_i32, %c0_i32_0 : i32, i32, i32
  }
  func.func @transform_6(%arg0: i32, %arg1: i32) -> (i32, i32, i32) {
    %c0_i32 = arith.constant 0 : i32
    %c0_i32_0 = arith.constant 0 : i32
    %c0_i32_1 = arith.constant 0 : i32
    return %arg1, %c0_i32, %c0_i32_0 : i32, i32, i32
  }
  func.func @transform_7(%arg0: i32, %arg1: i32) -> (i32, i32) {
    %c0_i32 = arith.constant 0 : i32
    %c0_i32_0 = arith.constant 0 : i32
    %c0_i32_1 = arith.constant 0 : i32
    return %c0_i32, %c0_i32_0 : i32, i32
  }
  func.func @transform_8(%arg0: i32, %arg1: i32) -> (i32, i32, i32) {
    %c0_i32 = arith.constant 0 : i32
    %c0_i32_0 = arith.constant 0 : i32
    %c0_i32_1 = arith.constant 0 : i32
    return %arg0, %c0_i32, %c0_i32_0 : i32, i32, i32
  }
}

module attributes {stable_mosaic.version = 11 : i64} {
  func.func @_fused_cross_attn_kernel(%arg0: i32, %arg1: i32, %arg2: memref<1x8x32xf32, #tpu.memory_space<vmem>>, %arg3: memref<1x8x32xf32, #tpu.memory_space<vmem>>, %arg4: memref<1x32xf32, #tpu.memory_space<vmem>>, %arg5: memref<1x32xf32, #tpu.memory_space<vmem>>, %arg6: memref<1x32xf32, #tpu.memory_space<vmem>>, %arg7: memref<1x32xf32, #tpu.memory_space<vmem>>, %arg8: memref<1x32x8xf32, #tpu.memory_space<vmem>>, %arg9: memref<1x32x8xf32, #tpu.memory_space<vmem>>, %arg10: memref<1x32x8xf32, #tpu.memory_space<vmem>>, %arg11: memref<1x8x32xf32, #tpu.memory_space<vmem>>, %arg12: memref<1x32xf32, #tpu.memory_space<vmem>>, %arg13: memref<1x8x32xf32, #tpu.memory_space<vmem>>, %arg14: memref<8x32xf32, #tpu.memory_space<vmem>>, %arg15: memref<8x32xf32, #tpu.memory_space<vmem>>, %arg16: memref<8x32xf32, #tpu.memory_space<vmem>>) attributes {dimension_semantics = [#tpu.dimension_semantics<parallel>, #tpu.dimension_semantics<arbitrary>], iteration_bounds = array<i64: 2, 4>, scalar_prefetch = 0 : i64, scratch_operands = 3 : i64, tpu.core_type = #tpu.core_type<tc>, window_params = [{transform_indices = @transform_0, window_bounds = array<i64: 1, 8, 32>}, {transform_indices = @transform_1, window_bounds = array<i64: 1, 8, 32>}, {pipeline_mode = #tpu.pipeline_mode<synchronous>, transform_indices = @transform_2, window_bounds = array<i64: 1, 32>}, {pipeline_mode = #tpu.pipeline_mode<synchronous>, transform_indices = @transform_3, window_bounds = array<i64: 1, 32>}, {pipeline_mode = #tpu.pipeline_mode<synchronous>, transform_indices = @transform_4, window_bounds = array<i64: 1, 32>}, {pipeline_mode = #tpu.pipeline_mode<synchronous>, transform_indices = @transform_5, window_bounds = array<i64: 1, 32>}, {transform_indices = @transform_6, window_bounds = array<i64: 1, 32, 8>}, {transform_indices = @transform_7, window_bounds = array<i64: 1, 32, 8>}, {transform_indices = @transform_8, window_bounds = array<i64: 1, 32, 8>}, {transform_indices = @transform_9, window_bounds = array<i64: 1, 8, 32>}, {pipeline_mode = #tpu.pipeline_mode<synchronous>, transform_indices = @transform_10, window_bounds = array<i64: 1, 32>}, {transform_indices = @transform_11, window_bounds = array<i64: 1, 8, 32>}]} {
    %c0_i32 = arith.constant 0 : i32
    %0 = arith.cmpi eq, %arg1, %c0_i32 : i32
    %1 = arith.extui %0 : i1 to i32
    %c0_i32_0 = arith.constant 0 : i32
    %2 = arith.cmpi ne, %1, %c0_i32_0 : i32
    scf.if %2 {
      %c0_28 = arith.constant 0 : index
      %c0_29 = arith.constant 0 : index
      %c0_30 = arith.constant 0 : index
      %35 = vector.load %arg2[%c0_28, %c0_29, %c0_30] : memref<1x8x32xf32, #tpu.memory_space<vmem>>, vector<1x8x32xf32>
      %36 = vector.shape_cast %35 : vector<1x8x32xf32> to vector<8x32xf32>
      %c0_31 = arith.constant 0 : index
      %c0_32 = arith.constant 0 : index
      %37 = vector.load %arg4[%c0_31, %c0_32] : memref<1x32xf32, #tpu.memory_space<vmem>>, vector<1x32xf32>
      %c0_33 = arith.constant 0 : index
      %c0_34 = arith.constant 0 : index
      %38 = vector.load %arg5[%c0_33, %c0_34] : memref<1x32xf32, #tpu.memory_space<vmem>>, vector<1x32xf32>
      %cst_35 = arith.constant dense<0.000000e+00> : vector<8xf32>
      %39 = vector.multi_reduction <add>, %36, %cst_35 [1] : vector<8x32xf32> to vector<8xf32>
      %40 = vector.shape_cast %39 : vector<8xf32> to vector<8x1xf32>
      %cst_36 = arith.constant 3.200000e+01 : f32
      %41 = vector.broadcast %cst_36 : f32 to vector<8x1xf32>
      %42 = arith.divf %40, %41 : vector<8x1xf32>
      %43 = vector.broadcast %42 : vector<8x1xf32> to vector<8x32xf32>
      %44 = arith.subf %36, %43 : vector<8x32xf32>
      %45 = arith.mulf %44, %44 : vector<8x32xf32>
      %cst_37 = arith.constant dense<0.000000e+00> : vector<8xf32>
      %46 = vector.multi_reduction <add>, %45, %cst_37 [1] : vector<8x32xf32> to vector<8xf32>
      %47 = vector.shape_cast %46 : vector<8xf32> to vector<8x1xf32>
      %cst_38 = arith.constant 3.200000e+01 : f32
      %48 = vector.broadcast %cst_38 : f32 to vector<8x1xf32>
      %49 = arith.divf %47, %48 : vector<8x1xf32>
      %cst_39 = arith.constant 9.99999974E-6 : f32
      %50 = vector.broadcast %cst_39 : f32 to vector<8x1xf32>
      %51 = arith.addf %49, %50 : vector<8x1xf32>
      %52 = math.rsqrt %51 : vector<8x1xf32>
      %53 = vector.broadcast %52 : vector<8x1xf32> to vector<8x32xf32>
      %54 = arith.mulf %44, %53 : vector<8x32xf32>
      %55 = vector.broadcast %37 : vector<1x32xf32> to vector<8x32xf32>
      %56 = arith.mulf %54, %55 : vector<8x32xf32>
      %57 = vector.broadcast %38 : vector<1x32xf32> to vector<8x32xf32>
      %58 = arith.addf %56, %57 : vector<8x32xf32>
      %c0_40 = arith.constant 0 : index
      %c0_41 = arith.constant 0 : index
      %59 = vector.load %arg14[%c0_40, %c0_41] : memref<8x32xf32, #tpu.memory_space<vmem>>, vector<8x32xf32>
      tpu.vector_store %arg14[%c0_40, %c0_41], %58 {strides = array<i32>} : memref<8x32xf32, #tpu.memory_space<vmem>>, vector<8x32xf32>,
      %c0_42 = arith.constant 0 : index
      %c0_43 = arith.constant 0 : index
      %c0_44 = arith.constant 0 : index
      %60 = vector.load %arg3[%c0_42, %c0_43, %c0_44] : memref<1x8x32xf32, #tpu.memory_space<vmem>>, vector<1x8x32xf32>
      %61 = vector.shape_cast %60 : vector<1x8x32xf32> to vector<8x32xf32>
      %c0_45 = arith.constant 0 : index
      %c0_46 = arith.constant 0 : index
      %62 = vector.load %arg6[%c0_45, %c0_46] : memref<1x32xf32, #tpu.memory_space<vmem>>, vector<1x32xf32>
      %c0_47 = arith.constant 0 : index
      %c0_48 = arith.constant 0 : index
      %63 = vector.load %arg7[%c0_47, %c0_48] : memref<1x32xf32, #tpu.memory_space<vmem>>, vector<1x32xf32>
      %cst_49 = arith.constant dense<0.000000e+00> : vector<8xf32>
      %64 = vector.multi_reduction <add>, %61, %cst_49 [1] : vector<8x32xf32> to vector<8xf32>
      %65 = vector.shape_cast %64 : vector<8xf32> to vector<8x1xf32>
      %cst_50 = arith.constant 3.200000e+01 : f32
      %66 = vector.broadcast %cst_50 : f32 to vector<8x1xf32>
      %67 = arith.divf %65, %66 : vector<8x1xf32>
      %68 = vector.broadcast %67 : vector<8x1xf32> to vector<8x32xf32>
      %69 = arith.subf %61, %68 : vector<8x32xf32>
      %70 = arith.mulf %69, %69 : vector<8x32xf32>
      %cst_51 = arith.constant dense<0.000000e+00> : vector<8xf32>
      %71 = vector.multi_reduction <add>, %70, %cst_51 [1] : vector<8x32xf32> to vector<8xf32>
      %72 = vector.shape_cast %71 : vector<8xf32> to vector<8x1xf32>
      %cst_52 = arith.constant 3.200000e+01 : f32
      %73 = vector.broadcast %cst_52 : f32 to vector<8x1xf32>
      %74 = arith.divf %72, %73 : vector<8x1xf32>
      %cst_53 = arith.constant 9.99999974E-6 : f32
      %75 = vector.broadcast %cst_53 : f32 to vector<8x1xf32>
      %76 = arith.addf %74, %75 : vector<8x1xf32>
      %77 = math.rsqrt %76 : vector<8x1xf32>
      %78 = vector.broadcast %77 : vector<8x1xf32> to vector<8x32xf32>
      %79 = arith.mulf %69, %78 : vector<8x32xf32>
      %80 = vector.broadcast %62 : vector<1x32xf32> to vector<8x32xf32>
      %81 = arith.mulf %79, %80 : vector<8x32xf32>
      %82 = vector.broadcast %63 : vector<1x32xf32> to vector<8x32xf32>
      %83 = arith.addf %81, %82 : vector<8x32xf32>
      %c0_54 = arith.constant 0 : index
      %c0_55 = arith.constant 0 : index
      %84 = vector.load %arg15[%c0_54, %c0_55] : memref<8x32xf32, #tpu.memory_space<vmem>>, vector<8x32xf32>
      tpu.vector_store %arg15[%c0_54, %c0_55], %83 {strides = array<i32>} : memref<8x32xf32, #tpu.memory_space<vmem>>, vector<8x32xf32>,
      %c0_56 = arith.constant 0 : index
      %c0_57 = arith.constant 0 : index
      %85 = vector.load %arg12[%c0_56, %c0_57] : memref<1x32xf32, #tpu.memory_space<vmem>>, vector<1x32xf32>
      %86 = vector.broadcast %85 : vector<1x32xf32> to vector<8x32xf32>
      %87 = arith.addf %36, %86 : vector<8x32xf32>
      %c0_58 = arith.constant 0 : index
      %c0_59 = arith.constant 0 : index
      %88 = vector.load %arg16[%c0_58, %c0_59] : memref<8x32xf32, #tpu.memory_space<vmem>>, vector<8x32xf32>
      tpu.vector_store %arg16[%c0_58, %c0_59], %87 {strides = array<i32>} : memref<8x32xf32, #tpu.memory_space<vmem>>, vector<8x32xf32>,
    } else {
    }
    %c0 = arith.constant 0 : index
    %c0_1 = arith.constant 0 : index
    %3 = vector.load %arg14[%c0, %c0_1] : memref<8x32xf32, #tpu.memory_space<vmem>>, vector<8x32xf32>
    %c0_2 = arith.constant 0 : index
    %c0_3 = arith.constant 0 : index
    %c0_4 = arith.constant 0 : index
    %4 = vector.load %arg8[%c0_2, %c0_3, %c0_4] : memref<1x32x8xf32, #tpu.memory_space<vmem>>, vector<1x32x8xf32>
    %5 = vector.shape_cast %4 : vector<1x32x8xf32> to vector<32x8xf32>
    %cst = arith.constant dense<0.000000e+00> : vector<8x8xf32>
    %6 = tpu.matmul %3, %5, %cst {dimension_numbers = #tpu.dot_dimension_numbers<[1], [0], [0], [1], [0, 0, 1, 1], [], []>} : vector<8x32xf32>, vector<32x8xf32>, vector<8x8xf32> -> vector<8x8xf32>
    %c0_5 = arith.constant 0 : index
    %c0_6 = arith.constant 0 : index
    %7 = vector.load %arg15[%c0_5, %c0_6] : memref<8x32xf32, #tpu.memory_space<vmem>>, vector<8x32xf32>
    %c0_7 = arith.constant 0 : index
    %c0_8 = arith.constant 0 : index
    %c0_9 = arith.constant 0 : index
    %8 = vector.load %arg9[%c0_7, %c0_8, %c0_9] : memref<1x32x8xf32, #tpu.memory_space<vmem>>, vector<1x32x8xf32>
    %9 = vector.shape_cast %8 : vector<1x32x8xf32> to vector<32x8xf32>
    %cst_10 = arith.constant dense<0.000000e+00> : vector<8x8xf32>
    %10 = tpu.matmul %7, %9, %cst_10 {dimension_numbers = #tpu.dot_dimension_numbers<[1], [0], [0], [1], [0, 0, 1, 1], [], []>} : vector<8x32xf32>, vector<32x8xf32>, vector<8x8xf32> -> vector<8x8xf32>
    %c0_11 = arith.constant 0 : index
    %c0_12 = arith.constant 0 : index
    %c0_13 = arith.constant 0 : index
    %11 = vector.load %arg10[%c0_11, %c0_12, %c0_13] : memref<1x32x8xf32, #tpu.memory_space<vmem>>, vector<1x32x8xf32>
    %12 = vector.shape_cast %11 : vector<1x32x8xf32> to vector<32x8xf32>
    %cst_14 = arith.constant dense<0.000000e+00> : vector<8x8xf32>
    %13 = tpu.matmul %7, %12, %cst_14 {dimension_numbers = #tpu.dot_dimension_numbers<[1], [0], [0], [1], [0, 0, 1, 1], [], []>} : vector<8x32xf32>, vector<32x8xf32>, vector<8x8xf32> -> vector<8x8xf32>
    %cst_15 = arith.constant dense<0.000000e+00> : vector<8x8xf32>
    %14 = tpu.matmul %6, %10, %cst_15 {dimension_numbers = #tpu.dot_dimension_numbers<[1], [1], [0], [0], [0, 0, 1, 0], [], []>} : vector<8x8xf32>, vector<8x8xf32>, vector<8x8xf32> -> vector<8x8xf32>
    %cst_16 = arith.constant dense<0xFF800000> : vector<8xf32>
    %15 = vector.multi_reduction <maximumf>, %14, %cst_16 [1] : vector<8x8xf32> to vector<8xf32>
    %16 = vector.shape_cast %15 : vector<8xf32> to vector<8x1xf32>
    %17 = vector.broadcast %16 : vector<8x1xf32> to vector<8x8xf32>
    %18 = arith.subf %14, %17 : vector<8x8xf32>
    %19 = math.exp %18 : vector<8x8xf32>
    %cst_17 = arith.constant dense<0.000000e+00> : vector<8xf32>
    %20 = vector.multi_reduction <add>, %19, %cst_17 [1] : vector<8x8xf32> to vector<8xf32>
    %21 = vector.shape_cast %20 : vector<8xf32> to vector<8x1xf32>
    %22 = tpu.reciprocal %21 {approx = true} : vector<8x1xf32> -> vector<8x1xf32>
    %23 = vector.broadcast %22 : vector<8x1xf32> to vector<8x8xf32>
    %24 = arith.mulf %19, %23 : vector<8x8xf32>
    %cst_18 = arith.constant dense<0.000000e+00> : vector<8x8xf32>
    %25 = tpu.matmul %24, %13, %cst_18 {dimension_numbers = #tpu.dot_dimension_numbers<[1], [0], [0], [1], [0, 0, 1, 1], [], []>} : vector<8x8xf32>, vector<8x8xf32>, vector<8x8xf32> -> vector<8x8xf32>
    %c0_19 = arith.constant 0 : index
    %c0_20 = arith.constant 0 : index
    %26 = vector.load %arg16[%c0_19, %c0_20] : memref<8x32xf32, #tpu.memory_space<vmem>>, vector<8x32xf32>
    %c0_21 = arith.constant 0 : index
    %c0_22 = arith.constant 0 : index
    %c0_23 = arith.constant 0 : index
    %27 = vector.load %arg11[%c0_21, %c0_22, %c0_23] : memref<1x8x32xf32, #tpu.memory_space<vmem>>, vector<1x8x32xf32>
    %28 = vector.shape_cast %27 : vector<1x8x32xf32> to vector<8x32xf32>
    %cst_24 = arith.constant dense<0.000000e+00> : vector<8x32xf32>
    %29 = tpu.matmul %25, %28, %cst_24 {dimension_numbers = #tpu.dot_dimension_numbers<[1], [0], [0], [1], [0, 0, 1, 1], [], []>} : vector<8x8xf32>, vector<8x32xf32>, vector<8x32xf32> -> vector<8x32xf32>
    %30 = arith.addf %26, %29 : vector<8x32xf32>
    %c0_25 = arith.constant 0 : index
    %c0_26 = arith.constant 0 : index
    %31 = vector.load %arg16[%c0_25, %c0_26] : memref<8x32xf32, #tpu.memory_space<vmem>>, vector<8x32xf32>
    tpu.vector_store %arg16[%c0_25, %c0_26], %30 {strides = array<i32>} : memref<8x32xf32, #tpu.memory_space<vmem>>, vector<8x32xf32>,
    %c3_i32 = arith.constant 3 : i32
    %32 = arith.cmpi eq, %arg1, %c3_i32 : i32
    %33 = arith.extui %32 : i1 to i32
    %c0_i32_27 = arith.constant 0 : i32
    %34 = arith.cmpi ne, %33, %c0_i32_27 : i32
    scf.if %34 {
      %c0_28 = arith.constant 0 : index
      %c0_29 = arith.constant 0 : index
      %35 = vector.load %arg16[%c0_28, %c0_29] : memref<8x32xf32, #tpu.memory_space<vmem>>, vector<8x32xf32>
      %c0_30 = arith.constant 0 : index
      %c0_31 = arith.constant 0 : index
      %c0_32 = arith.constant 0 : index
      %36 = vector.load %arg13[%c0_30, %c0_31, %c0_32] : memref<1x8x32xf32, #tpu.memory_space<vmem>>, vector<1x8x32xf32>
      %37 = vector.shape_cast %36 : vector<1x8x32xf32> to vector<8x32xf32>
      %38 = vector.shape_cast %35 : vector<8x32xf32> to vector<1x8x32xf32>
      tpu.vector_store %arg13[%c0_30, %c0_31, %c0_32], %38 {strides = array<i32>} : memref<1x8x32xf32, #tpu.memory_space<vmem>>, vector<1x8x32xf32>,
    } else {
    }
    return
  }
  func.func @transform_0(%arg0: i32, %arg1: i32) -> (i32, i32, i32) {
    %c0_i32 = arith.constant 0 : i32
    %c0_i32_0 = arith.constant 0 : i32
    %c0_i32_1 = arith.constant 0 : i32
    return %arg0, %c0_i32, %c0_i32_0 : i32, i32, i32
  }
  func.func @transform_1(%arg0: i32, %arg1: i32) -> (i32, i32, i32) {
    %c0_i32 = arith.constant 0 : i32
    %c0_i32_0 = arith.constant 0 : i32
    %c0_i32_1 = arith.constant 0 : i32
    return %arg0, %c0_i32, %c0_i32_0 : i32, i32, i32
  }
  func.func @transform_2(%arg0: i32, %arg1: i32) -> (i32, i32) {
    %c0_i32 = arith.constant 0 : i32
    %c0_i32_0 = arith.constant 0 : i32
    %c0_i32_1 = arith.constant 0 : i32
    return %c0_i32, %c0_i32_0 : i32, i32
  }
  func.func @transform_3(%arg0: i32, %arg1: i32) -> (i32, i32) {
    %c0_i32 = arith.constant 0 : i32
    %c0_i32_0 = arith.constant 0 : i32
    %c0_i32_1 = arith.constant 0 : i32
    return %c0_i32, %c0_i32_0 : i32, i32
  }
  func.func @transform_4(%arg0: i32, %arg1: i32) -> (i32, i32) {
    %c0_i32 = arith.constant 0 : i32
    %c0_i32_0 = arith.constant 0 : i32
    %c0_i32_1 = arith.constant 0 : i32
    return %c0_i32, %c0_i32_0 : i32, i32
  }
  func.func @transform_5(%arg0: i32, %arg1: i32) -> (i32, i32) {
    %c0_i32 = arith.constant 0 : i32
    %c0_i32_0 = arith.constant 0 : i32
    %c0_i32_1 = arith.constant 0 : i32
    return %c0_i32, %c0_i32_0 : i32, i32
  }
  func.func @transform_6(%arg0: i32, %arg1: i32) -> (i32, i32, i32) {
    %c0_i32 = arith.constant 0 : i32
    %c0_i32_0 = arith.constant 0 : i32
    %c0_i32_1 = arith.constant 0 : i32
    return %arg1, %c0_i32, %c0_i32_0 : i32, i32, i32
  }
  func.func @transform_7(%arg0: i32, %arg1: i32) -> (i32, i32, i32) {
    %c0_i32 = arith.constant 0 : i32
    %c0_i32_0 = arith.constant 0 : i32
    %c0_i32_1 = arith.constant 0 : i32
    return %arg1, %c0_i32, %c0_i32_0 : i32, i32, i32
  }
  func.func @transform_8(%arg0: i32, %arg1: i32) -> (i32, i32, i32) {
    %c0_i32 = arith.constant 0 : i32
    %c0_i32_0 = arith.constant 0 : i32
    %c0_i32_1 = arith.constant 0 : i32
    return %arg1, %c0_i32, %c0_i32_0 : i32, i32, i32
  }
  func.func @transform_9(%arg0: i32, %arg1: i32) -> (i32, i32, i32) {
    %c0_i32 = arith.constant 0 : i32
    %c0_i32_0 = arith.constant 0 : i32
    %c0_i32_1 = arith.constant 0 : i32
    return %arg1, %c0_i32, %c0_i32_0 : i32, i32, i32
  }
  func.func @transform_10(%arg0: i32, %arg1: i32) -> (i32, i32) {
    %c0_i32 = arith.constant 0 : i32
    %c0_i32_0 = arith.constant 0 : i32
    %c0_i32_1 = arith.constant 0 : i32
    return %c0_i32, %c0_i32_0 : i32, i32
  }
  func.func @transform_11(%arg0: i32, %arg1: i32) -> (i32, i32, i32) {
    %c0_i32 = arith.constant 0 : i32
    %c0_i32_0 = arith.constant 0 : i32
    %c0_i32_1 = arith.constant 0 : i32
    return %arg0, %c0_i32, %c0_i32_0 : i32, i32, i32
  }
}

module attributes {stable_mosaic.version = 11 : i64} {
  func.func @_linear_res_kernel(%arg0: i32, %arg1: i32, %arg2: memref<16x128xf32, #tpu.memory_space<vmem>>, %arg3: memref<128x32xf32, #tpu.memory_space<vmem>>, %arg4: memref<1x32xf32, #tpu.memory_space<vmem>>, %arg5: memref<16x32xf32, #tpu.memory_space<vmem>>, %arg6: memref<16x32xf32, #tpu.memory_space<vmem>>) attributes {dimension_semantics = [#tpu.dimension_semantics<parallel>, #tpu.dimension_semantics<parallel>], iteration_bounds = array<i64: 1, 1>, scalar_prefetch = 0 : i64, scratch_operands = 0 : i64, tpu.core_type = #tpu.core_type<tc>, window_params = [{transform_indices = @transform_0, window_bounds = array<i64: 16, 128>}, {transform_indices = @transform_1, window_bounds = array<i64: 128, 32>}, {transform_indices = @transform_2, window_bounds = array<i64: 1, 32>}, {transform_indices = @transform_3, window_bounds = array<i64: 16, 32>}, {transform_indices = @transform_4, window_bounds = array<i64: 16, 32>}]} {
    %c0 = arith.constant 0 : index
    %c0_0 = arith.constant 0 : index
    %0 = vector.load %arg2[%c0, %c0_0] : memref<16x128xf32, #tpu.memory_space<vmem>>, vector<16x128xf32>
    %c0_1 = arith.constant 0 : index
    %c0_2 = arith.constant 0 : index
    %1 = vector.load %arg3[%c0_1, %c0_2] : memref<128x32xf32, #tpu.memory_space<vmem>>, vector<128x32xf32>
    %cst = arith.constant dense<0.000000e+00> : vector<16x32xf32>
    %2 = tpu.matmul %0, %1, %cst {dimension_numbers = #tpu.dot_dimension_numbers<[1], [0], [0], [1], [0, 0, 1, 1], [], []>} : vector<16x128xf32>, vector<128x32xf32>, vector<16x32xf32> -> vector<16x32xf32>
    %c0_3 = arith.constant 0 : index
    %c0_4 = arith.constant 0 : index
    %3 = vector.load %arg4[%c0_3, %c0_4] : memref<1x32xf32, #tpu.memory_space<vmem>>, vector<1x32xf32>
    %4 = vector.broadcast %3 : vector<1x32xf32> to vector<16x32xf32>
    %5 = arith.addf %2, %4 : vector<16x32xf32>
    %c0_5 = arith.constant 0 : index
    %c0_6 = arith.constant 0 : index
    %6 = vector.load %arg5[%c0_5, %c0_6] : memref<16x32xf32, #tpu.memory_space<vmem>>, vector<16x32xf32>
    %7 = arith.addf %5, %6 : vector<16x32xf32>
    %c0_7 = arith.constant 0 : index
    %c0_8 = arith.constant 0 : index
    %8 = vector.load %arg6[%c0_7, %c0_8] : memref<16x32xf32, #tpu.memory_space<vmem>>, vector<16x32xf32>
    tpu.vector_store %arg6[%c0_7, %c0_8], %7 {strides = array<i32>} : memref<16x32xf32, #tpu.memory_space<vmem>>, vector<16x32xf32>,
    return
  }
  func.func @transform_0(%arg0: i32, %arg1: i32) -> (i32, i32) {
    %c0_i32 = arith.constant 0 : i32
    %c0_i32_0 = arith.constant 0 : i32
    return %arg0, %c0_i32 : i32, i32
  }
  func.func @transform_1(%arg0: i32, %arg1: i32) -> (i32, i32) {
    %c0_i32 = arith.constant 0 : i32
    %c0_i32_0 = arith.constant 0 : i32
    return %c0_i32, %arg1 : i32, i32
  }
  func.func @transform_2(%arg0: i32, %arg1: i32) -> (i32, i32) {
    %c0_i32 = arith.constant 0 : i32
    %c0_i32_0 = arith.constant 0 : i32
    return %c0_i32, %arg1 : i32, i32
  }
  func.func @transform_3(%arg0: i32, %arg1: i32) -> (i32, i32) {
    %c0_i32 = arith.constant 0 : i32
    return %arg0, %arg1 : i32, i32
  }
  func.func @transform_4(%arg0: i32, %arg1: i32) -> (i32, i32) {
    %c0_i32 = arith.constant 0 : i32
    return %arg0, %arg1 : i32, i32
  }
}

module attributes {stable_mosaic.version = 11 : i64} {
  func.func @_ln_linear_kernel(%arg0: i32, %arg1: i32, %arg2: memref<16x32xf32, #tpu.memory_space<vmem>>, %arg3: memref<1x32xf32, #tpu.memory_space<vmem>>, %arg4: memref<1x32xf32, #tpu.memory_space<vmem>>, %arg5: memref<32x128xf32, #tpu.memory_space<vmem>>, %arg6: memref<1x128xf32, #tpu.memory_space<vmem>>, %arg7: memref<16x128xf32, #tpu.memory_space<vmem>>, %arg8: memref<16x32xf32, #tpu.memory_space<vmem>>) attributes {dimension_semantics = [#tpu.dimension_semantics<parallel>, #tpu.dimension_semantics<arbitrary>], iteration_bounds = array<i64: 1, 1>, scalar_prefetch = 0 : i64, scratch_operands = 1 : i64, tpu.core_type = #tpu.core_type<tc>, window_params = [{transform_indices = @transform_0, window_bounds = array<i64: 16, 32>}, {pipeline_mode = #tpu.pipeline_mode<synchronous>, transform_indices = @transform_1, window_bounds = array<i64: 1, 32>}, {pipeline_mode = #tpu.pipeline_mode<synchronous>, transform_indices = @transform_2, window_bounds = array<i64: 1, 32>}, {transform_indices = @transform_3, window_bounds = array<i64: 32, 128>}, {transform_indices = @transform_4, window_bounds = array<i64: 1, 128>}, {transform_indices = @transform_5, window_bounds = array<i64: 16, 128>}]} {
    %c0_i32 = arith.constant 0 : i32
    %0 = arith.cmpi eq, %arg1, %c0_i32 : i32
    %1 = arith.extui %0 : i1 to i32
    %c0_i32_0 = arith.constant 0 : i32
    %2 = arith.cmpi ne, %1, %c0_i32_0 : i32
    scf.if %2 {
      %c0_11 = arith.constant 0 : index
      %c0_12 = arith.constant 0 : index
      %18 = vector.load %arg2[%c0_11, %c0_12] : memref<16x32xf32, #tpu.memory_space<vmem>>, vector<16x32xf32>
      %c0_13 = arith.constant 0 : index
      %c0_14 = arith.constant 0 : index
      %19 = vector.load %arg3[%c0_13, %c0_14] : memref<1x32xf32, #tpu.memory_space<vmem>>, vector<1x32xf32>
      %c0_15 = arith.constant 0 : index
      %c0_16 = arith.constant 0 : index
      %20 = vector.load %arg4[%c0_15, %c0_16] : memref<1x32xf32, #tpu.memory_space<vmem>>, vector<1x32xf32>
      %cst_17 = arith.constant dense<0.000000e+00> : vector<16xf32>
      %21 = vector.multi_reduction <add>, %18, %cst_17 [1] : vector<16x32xf32> to vector<16xf32>
      %22 = vector.shape_cast %21 : vector<16xf32> to vector<16x1xf32>
      %cst_18 = arith.constant 3.200000e+01 : f32
      %23 = vector.broadcast %cst_18 : f32 to vector<16x1xf32>
      %24 = arith.divf %22, %23 : vector<16x1xf32>
      %25 = vector.broadcast %24 : vector<16x1xf32> to vector<16x32xf32>
      %26 = arith.subf %18, %25 : vector<16x32xf32>
      %27 = arith.mulf %26, %26 : vector<16x32xf32>
      %cst_19 = arith.constant dense<0.000000e+00> : vector<16xf32>
      %28 = vector.multi_reduction <add>, %27, %cst_19 [1] : vector<16x32xf32> to vector<16xf32>
      %29 = vector.shape_cast %28 : vector<16xf32> to vector<16x1xf32>
      %cst_20 = arith.constant 3.200000e+01 : f32
      %30 = vector.broadcast %cst_20 : f32 to vector<16x1xf32>
      %31 = arith.divf %29, %30 : vector<16x1xf32>
      %cst_21 = arith.constant 9.99999974E-6 : f32
      %32 = vector.broadcast %cst_21 : f32 to vector<16x1xf32>
      %33 = arith.addf %31, %32 : vector<16x1xf32>
      %34 = math.rsqrt %33 : vector<16x1xf32>
      %35 = vector.broadcast %34 : vector<16x1xf32> to vector<16x32xf32>
      %36 = arith.mulf %26, %35 : vector<16x32xf32>
      %37 = vector.broadcast %19 : vector<1x32xf32> to vector<16x32xf32>
      %38 = arith.mulf %36, %37 : vector<16x32xf32>
      %39 = vector.broadcast %20 : vector<1x32xf32> to vector<16x32xf32>
      %40 = arith.addf %38, %39 : vector<16x32xf32>
      %c0_22 = arith.constant 0 : index
      %c0_23 = arith.constant 0 : index
      %41 = vector.load %arg8[%c0_22, %c0_23] : memref<16x32xf32, #tpu.memory_space<vmem>>, vector<16x32xf32>
      tpu.vector_store %arg8[%c0_22, %c0_23], %40 {strides = array<i32>} : memref<16x32xf32, #tpu.memory_space<vmem>>, vector<16x32xf32>,
    } else {
    }
    %c0 = arith.constant 0 : index
    %c0_1 = arith.constant 0 : index
    %3 = vector.load %arg8[%c0, %c0_1] : memref<16x32xf32, #tpu.memory_space<vmem>>, vector<16x32xf32>
    %c0_2 = arith.constant 0 : index
    %c0_3 = arith.constant 0 : index
    %4 = vector.load %arg5[%c0_2, %c0_3] : memref<32x128xf32, #tpu.memory_space<vmem>>, vector<32x128xf32>
    %cst = arith.constant dense<0.000000e+00> : vector<16x128xf32>
    %5 = tpu.matmul %3, %4, %cst {dimension_numbers = #tpu.dot_dimension_numbers<[1], [0], [0], [1], [0, 0, 1, 1], [], []>} : vector<16x32xf32>, vector<32x128xf32>, vector<16x128xf32> -> vector<16x128xf32>
    %c0_4 = arith.constant 0 : index
    %c0_5 = arith.constant 0 : index
    %6 = vector.load %arg6[%c0_4, %c0_5] : memref<1x128xf32, #tpu.memory_space<vmem>>, vector<1x128xf32>
    %7 = vector.broadcast %6 : vector<1x128xf32> to vector<16x128xf32>
    %8 = arith.addf %5, %7 : vector<16x128xf32>
    %cst_6 = arith.constant 5.000000e-01 : f32
    %9 = vector.broadcast %cst_6 : f32 to vector<16x128xf32>
    %10 = arith.mulf %9, %8 : vector<16x128xf32>
    %cst_7 = arith.constant 0.707106769 : f32
    %11 = vector.broadcast %cst_7 : f32 to vector<16x128xf32>
    %12 = arith.mulf %8, %11 : vector<16x128xf32>
    %13 = math.erf %12 : vector<16x128xf32>
    %cst_8 = arith.constant 1.000000e+00 : f32
    %14 = vector.broadcast %cst_8 : f32 to vector<16x128xf32>
    %15 = arith.addf %14, %13 : vector<16x128xf32>
    %16 = arith.mulf %10, %15 : vector<16x128xf32>
    %c0_9 = arith.constant 0 : index
    %c0_10 = arith.constant 0 : index
    %17 = vector.load %arg7[%c0_9, %c0_10] : memref<16x128xf32, #tpu.memory_space<vmem>>, vector<16x128xf32>
    tpu.vector_store %arg7[%c0_9, %c0_10], %16 {strides = array<i32>} : memref<16x128xf32, #tpu.memory_space<vmem>>, vector<16x128xf32>,
    return
  }
  func.func @transform_0(%arg0: i32, %arg1: i32) -> (i32, i32) {
    %c0_i32 = arith.constant 0 : i32
    %c0_i32_0 = arith.constant 0 : i32
    return %arg0, %c0_i32 : i32, i32
  }
  func.func @transform_1(%arg0: i32, %arg1: i32) -> (i32, i32) {
    %c0_i32 = arith.constant 0 : i32
    %c0_i32_0 = arith.constant 0 : i32
    %c0_i32_1 = arith.constant 0 : i32
    return %c0_i32, %c0_i32_0 : i32, i32
  }
  func.func @transform_2(%arg0: i32, %arg1: i32) -> (i32, i32) {
    %c0_i32 = arith.constant 0 : i32
    %c0_i32_0 = arith.constant 0 : i32
    %c0_i32_1 = arith.constant 0 : i32
    return %c0_i32, %c0_i32_0 : i32, i32
  }
  func.func @transform_3(%arg0: i32, %arg1: i32) -> (i32, i32) {
    %c0_i32 = arith.constant 0 : i32
    %c0_i32_0 = arith.constant 0 : i32
    return %c0_i32, %arg1 : i32, i32
  }
  func.func @transform_4(%arg0: i32, %arg1: i32) -> (i32, i32) {
    %c0_i32 = arith.constant 0 : i32
    %c0_i32_0 = arith.constant 0 : i32
    return %c0_i32, %arg1 : i32, i32
  }
  func.func @transform_5(%arg0: i32, %arg1: i32) -> (i32, i32) {
    %c0_i32 = arith.constant 0 : i32
    return %arg0, %arg1 : i32, i32
  }
}

</mosaic_0001>

<llo_original>
// kernel: block_forward.7
$region0: #{block_forward.7}
  #allocation0 [shape = 'u32[]', space=smem, size = 0x4, offset = 0x4, fixed_abs, tag = 'smem constant byte address 0x4 - core index']
  #allocation1 [shape = 'u32[72,128]{1,0:T(1,128)}', space=vmem, size = 0x9000, scoped, tag = 'internal scratch']
  %s0 = inlined_call_operand.vmem [shape: f32[16,128], index: 0, kind: input, shape index: {}]
  %s1 = inlined_call_operand.vmem [shape: f32[128,32], index: 1, kind: input, shape index: {}]
  %s2 = inlined_call_operand.vmem [shape: f32[1,32], index: 2, kind: input, shape index: {}]
  %s3 = inlined_call_operand.vmem [shape: f32[16,32], index: 3, kind: input, shape index: {}]
  %s4 = inlined_call_operand.hbm [shape: f32[16,32], index: 4, kind: output, shape index: {}]
  %s5 = sld [smem:[#allocation0]]
  $region26: #{block_forward.7} parent=0
    _
  %s7 = ssub.s32 1, %s5
  %s8 = scalar_select 0, %s7, %s5
  $region1: #{block_forward.7} parent=0
    #allocation2 [shape = 'u8[8192]{0}', space=vmem, size = 0x2000, scoped, tag = 'output window, operand 0, single buffered']
    #allocation3 [shape = 's32[1]{0}', space=sflag, size = 0x4, scoped, tag = 'scoped memory for block_forward.7']
    %9 = vsyncpa [#allocation3], 0
    // Predicated region
    $region2: #{block_forward.7} parent=1 // pred_check
      _
    $region3: #{block_forward.7} parent=1 // pred_check_branch
      %11 = sbr.rel (0) target = $region5
    $region4: #{block_forward.7} parent=1 // pred_region
      _
    $region5: #{block_forward.7} parent=1 // pred_fallthru
      _
    // Predicated region
    $region6: #{block_forward.7} parent=1 // pred_check
      _
    $region7: #{block_forward.7} parent=1 // pred_check_branch
      %13 = sbr.rel (0) target = $region9
    $region8: #{block_forward.7} parent=1 // pred_region
      _
    $region9: #{block_forward.7} parent=1 // pred_fallthru
      _
    // Predicated region
    $region10: #{block_forward.7} parent=1 // pred_check
      _
    $region11: #{block_forward.7} parent=1 // pred_check_branch
      %15 = sbr.rel (0) target = $region13
    $region12: #{block_forward.7} parent=1 // pred_region
      _
    $region13: #{block_forward.7} parent=1 // pred_fallthru
      _
    // Predicated region
    $region14: #{block_forward.7} parent=1 // pred_check
      _
    $region15: #{block_forward.7} parent=1 // pred_check_branch
      %17 = sbr.rel (0) target = $region17
    $region16: #{block_forward.7} parent=1 // pred_region
      _
    $region17: #{block_forward.7} parent=1 // pred_fallthru
      _
    %v18 = vld [vmem:[%s0] sm:$0xff]
    %v19 = vld [vmem:[%s0 + $0x8] sm:$0xff]
    %v20 = vld [vmem:[%s1] sm:$0xff]
    %v21 = vld [vmem:[%s1 + $0x8] sm:$0xff]
    %v22 = vld [vmem:[%s1 + $0x10] sm:$0xff]
    %v23 = vld [vmem:[%s1 + $0x18] sm:$0xff]
    %v24 = vld [vmem:[%s1 + $0x20] sm:$0xff]
    %v25 = vld [vmem:[%s1 + $0x28] sm:$0xff]
    %v26 = vld [vmem:[%s1 + $0x30] sm:$0xff]
    %v27 = vld [vmem:[%s1 + $0x38] sm:$0xff]
    %v28 = vld [vmem:[%s1 + $0x40] sm:$0xff]
    %v29 = vld [vmem:[%s1 + $0x48] sm:$0xff]
    %v30 = vld [vmem:[%s1 + $0x50] sm:$0xff]
    %v31 = vld [vmem:[%s1 + $0x58] sm:$0xff]
    %v32 = vld [vmem:[%s1 + $0x60] sm:$0xff]
    %v33 = vld [vmem:[%s1 + $0x68] sm:$0xff]
    %v34 = vld [vmem:[%s1 + $0x70] sm:$0xff]
    %v35 = vld [vmem:[%s1 + $0x78] sm:$0xff]
    %v36 = vld [vmem:[%s2] sm:$0x1]
    %v38 = vperm.slane %v36, 0
    %40 = vmatpush.msra.mxu0 %v35
    %41 = vmatpush.msra.mxu0 %v34
    %42 = vmatpush.msra.mxu0 %v33
    %43 = vmatpush.msra.mxu0 %v32
    %44 = vmatpush.msra.mxu0 %v31
    %45 = vmatpush.msra.mxu0 %v30
    %46 = vmatpush.msra.mxu0 %v29
    %47 = vmatpush.msra.mxu0 %v28
    %48 = vmatpush.msra.mxu0 %v27
    %49 = vmatpush.msra.mxu0 %v26
    %50 = vmatpush.msra.mxu0 %v25
    %51 = vmatpush.msra.mxu0 %v24
    %52 = vmatpush.msra.mxu0 %v23
    %53 = vmatpush.msra.mxu0 %v22
    %54 = vmatpush.msra.mxu0 %v21
    %55 = vmatpush.msra.mxu0 %v20
    %56 = vmatmul.f32.gmra.mxu0 %v18
    %v57 = vpop.f32.mrf.mxu0
    %v58 = vadd.f32 %v38, %v57
    %59 = vmatmul.f32.gmra.mxu0 %v19
    %v60 = vpop.f32.mrf.mxu0
    %v61 = vadd.f32 %v38, %v60
    %62 = vdwg.mxu0
    %v63 = vld [vmem:[%s3] sm:$0xff]
    %v64 = vld [vmem:[%s3 + $0x8] sm:$0xff]
    %v65 = vadd.f32 %v58, %v63
    %v66 = vadd.f32 %v61, %v64
    %vm67 = vcmask 261120
    %68 = vst.msk [vmem:[#allocation2] sm:$0xff] %vm67, %v65
    %69 = vst.msk [vmem:[#allocation2 + $0x8] sm:$0xff] %vm67, %v66
    // Predicated region
    $region18: #{block_forward.7} parent=1 // pred_check
      _
    $region19: #{block_forward.7} parent=1 // pred_check_branch
      %71 = sbr.rel (0) target = $region21
    $region20: #{block_forward.7} parent=1 // pred_region
      %73 = vsyncadd [#allocation3], 0
      %s74 = sshll.u32 [#allocation2], 4
      %s75 = int_to_ptr.vmem [resolvable:$true] %s74
      %s76 = sshll.u32 %s4, 4
      %s77 = int_to_ptr.hbm [resolvable:$true] %s76
      %82 = dma.vmem_to_hbm [thread:$0]  %s75, 256, %s77, [#allocation3], 128, 128, 8
    $region21: #{block_forward.7} parent=1 // pred_fallthru
      _
    // Predicated region
    $region22: #{block_forward.7} parent=1 // pred_check
      _
    $region23: #{block_forward.7} parent=1 // pred_check_branch
      %84 = sbr.rel (0) target = $region25
    $region24: #{block_forward.7} parent=1 // pred_region
      %86 = dma.done [#allocation3], 256
    $region25: #{block_forward.7} parent=1 // pred_fallthru
      _
    %87 = vsyncpa [#allocation3], 1

// kernel: block_forward.6
$region0: #{block_forward.6}
  #allocation0 [shape = 'u32[]', space=smem, size = 0x4, offset = 0x4, fixed_abs, tag = 'smem constant byte address 0x4 - core index']
  #allocation1 [shape = 'u32[72,128]{1,0:T(1,128)}', space=vmem, size = 0x9000, scoped, tag = 'internal scratch']
  #allocation2 [shape = 'f32[16,32]{1,0:T(8,128)}', space=vmem, size = 0x2000, scoped, tag = 'scratch operand']
  %s0 = inlined_call_operand.vmem [shape: f32[16,32], index: 0, kind: input, shape index: {}]
  %s1 = inlined_call_operand.vmem [shape: f32[1,32], index: 1, kind: input, shape index: {}]
  %s2 = inlined_call_operand.vmem [shape: f32[1,32], index: 2, kind: input, shape index: {}]
  %s3 = inlined_call_operand.vmem [shape: f32[32,128], index: 3, kind: input, shape index: {}]
  %s4 = inlined_call_operand.vmem [shape: f32[1,128], index: 4, kind: input, shape index: {}]
  %s5 = inlined_call_operand.vmem [shape: f32[16,128], index: 5, kind: output, shape index: {}]
  %s6 = sld [smem:[#allocation0]]
  $region34: #{block_forward.6} parent=0
    _
  %s8 = ssub.s32 1, %s6
  %s9 = scalar_select 0, %s8, %s6
  // Predicated region
  $region2: #{block_forward.6} parent=0 // pred_check
    _
  $region3: #{block_forward.6} parent=0 // pred_check_branch
    %11 = sbr.rel (0) target = $region5
  $region4: #{block_forward.6} parent=0 // pred_region
    _
  $region5: #{block_forward.6} parent=0 // pred_fallthru
    _
  // Predicated region
  $region6: #{block_forward.6} parent=0 // pred_check
    _
  $region7: #{block_forward.6} parent=0 // pred_check_branch
    %13 = sbr.rel (0) target = $region9
  $region8: #{block_forward.6} parent=0 // pred_region
    _
  $region9: #{block_forward.6} parent=0 // pred_fallthru
    _
  // Predicated region
  $region10: #{block_forward.6} parent=0 // pred_check
    _
  $region11: #{block_forward.6} parent=0 // pred_check_branch
    %15 = sbr.rel (0) target = $region13
  $region12: #{block_forward.6} parent=0 // pred_region
    _
  $region13: #{block_forward.6} parent=0 // pred_fallthru
    _
  // Predicated region
  $region14: #{block_forward.6} parent=0 // pred_check
    _
  $region15: #{block_forward.6} parent=0 // pred_check_branch
    %17 = sbr.rel (0) target = $region17
  $region16: #{block_forward.6} parent=0 // pred_region
    _
  $region17: #{block_forward.6} parent=0 // pred_fallthru
    _
  // Predicated region
  $region18: #{block_forward.6} parent=0 // pred_check
    _
  $region19: #{block_forward.6} parent=0 // pred_check_branch
    %19 = sbr.rel (0) target = $region21
  $region20: #{block_forward.6} parent=0 // pred_region
    _
  $region21: #{block_forward.6} parent=0 // pred_fallthru
    _
  %p20 = scmp.eq.s32.totalorder 0, 0
  // Predicated region
  $region22: #{block_forward.6} parent=0 // pred_check
    %p21 = pneg %p20
  $region23: #{block_forward.6} parent=0 // pred_check_branch
    %23 = sbr.rel (%p21) target = $region25
  $region24: #{block_forward.6} parent=0 // pred_region
    %v24 = vld [vmem:[%s0] sm:$0xff]
    %v25 = vld [vmem:[%s0 + $0x8] sm:$0xff]
    %v26 = vld [vmem:[%s1] sm:$0x1]
    %v27 = vld [vmem:[%s2] sm:$0x1]
    %vm28 = vcmask 261120
    %v29 = vsel %vm28, %v24, 0.0
    %30 = vadd.xlane.f32.xlu0 %v29
    %v31 = vpop.xlane.xlu0 %30
    %v32 = vsel %vm28, %v25, 0.0
    %33 = vadd.xlane.f32.xlu0 %v32
    %v34 = vpop.xlane.xlu0 %33
    %v35 = vrcp.pop 32.0
    %v36 = vmul.f32 32.0, %v35
    %v37 = vsub.f32 1.0, %v36
    %v38 = vmul.f32 %v35, %v37
    %v39 = vadd.f32 %v35, %v38
    %vm40 = vweird.f32 %v35
    %v41 = vsel %vm40, %v35, %v39
    %v42 = vmul.f32 %v31, %v41
    %v43 = vmul.f32 %v34, %v41
    %v44 = vsub.f32 %v24, %v42
    %v45 = vsub.f32 %v25, %v43
    %v46 = vmul.f32 %v44, %v44
    %v47 = vmul.f32 %v45, %v45
    %v48 = vsel %vm28, %v46, 0.0
    %49 = vadd.xlane.f32.xlu0 %v48
    %v50 = vpop.xlane.xlu0 %49
    %v51 = vsel %vm28, %v47, 0.0
    %52 = vadd.xlane.f32.xlu0 %v51
    %v53 = vpop.xlane.xlu0 %52
    %v54 = vmul.f32 %v50, %v41
    %v55 = vmul.f32 %v53, %v41
    %v56 = vadd.f32 %v54, 1e-05
    %v57 = vadd.f32 %v55, 1e-05
    %v58 = vrsqrt.pop %v56
    %v59 = vmul.f32 %v58, %v56
    %v60 = vmul.f32 %v59, %v58
    %v61 = vmul.f32 0.5, %v60
    %v62 = vsub.f32 1.5, %v61
    %v63 = vmul.f32 %v58, %v62
    %vm64 = vweird.f32 %v56
    %vm65 = vweird.f32 %v58
    %vm66 = vmor %vm64, %vm65
    %v67 = vsel %vm66, %v58, %v63
    %v68 = vrsqrt.pop %v57
    %v69 = vmul.f32 %v68, %v57
    %v70 = vmul.f32 %v69, %v68
    %v71 = vmul.f32 0.5, %v70
    %v72 = vsub.f32 1.5, %v71
    %v73 = vmul.f32 %v68, %v72
    %vm74 = vweird.f32 %v57
    %vm75 = vweird.f32 %v68
    %vm76 = vmor %vm74, %vm75
    %v77 = vsel %vm76, %v68, %v73
    %v78 = vmul.f32 %v44, %v67
    %v79 = vmul.f32 %v45, %v77
    %v81 = vperm.slane %v26, 0
    %v83 = vmul.f32 %v78, %v81
    %v84 = vmul.f32 %v79, %v81
    %v86 = vperm.slane %v27, 0
    %v88 = vadd.f32 %v83, %v86
    %v89 = vadd.f32 %v84, %v86
    %90 = vst.msk [vmem:[#allocation2] sm:$0xff] %vm28, %v88
    %91 = vst.msk [vmem:[#allocation2 + $0x8] sm:$0xff] %vm28, %v89
  $region25: #{block_forward.6} parent=0 // pred_fallthru
    _
  %v92 = vld [vmem:[#allocation2] sm:$0xff]
  %v93 = vld [vmem:[#allocation2 + $0x8] sm:$0xff]
  %v94 = vld [vmem:[%s3] sm:$0xff]
  %v95 = vld [vmem:[%s3 + $0x8] sm:$0xff]
  %v96 = vld [vmem:[%s3 + $0x10] sm:$0xff]
  %v97 = vld [vmem:[%s3 + $0x18] sm:$0xff]
  %v98 = vld [vmem:[%s4] sm:$0x1]
  %v100 = vperm.slane %v98, 0
  %vm102 = vcmask 261120
  %v104 = vsel %vm102, %v92, 0
  %v107 = vsel %vm102, %v93, 0
  %109 = vmatpush.msra.mxu0 0.0
  %110 = vmatpush.msra.mxu0 0.0
  %111 = vmatpush.msra.mxu0 0.0
  %112 = vmatpush.msra.mxu0 0.0
  %113 = vmatpush.msra.mxu0 0.0
  %114 = vmatpush.msra.mxu0 0.0
  %115 = vmatpush.msra.mxu0 0.0
  %116 = vmatpush.msra.mxu0 0.0
  %117 = vmatpush.msra.mxu0 0.0
  %118 = vmatpush.msra.mxu0 0.0
  %119 = vmatpush.msra.mxu0 0.0
  %120 = vmatpush.msra.mxu0 0.0
  %121 = vmatpush.msra.mxu0 %v97
  %122 = vmatpush.msra.mxu0 %v96
  %123 = vmatpush.msra.mxu0 %v95
  %124 = vmatpush.msra.mxu0 %v94
  %125 = vmatmul.f32.gmra.mxu0 %v104
  %v126 = vpop.f32.mrf.mxu0
  %v127 = vadd.f32 %v100, %v126
  %128 = vmatmul.f32.gmra.mxu0 %v107
  %v129 = vpop.f32.mrf.mxu0
  %v130 = vadd.f32 %v100, %v129
  %131 = vdwg.mxu0
  %v132 = vmul.f32 %v127, 0.5
  %v133 = vmul.f32 %v130, 0.5
  %v134 = vmul.f32 %v127, 0.70710677
  %v135 = vmul.f32 %v130, 0.70710677
  %v136 = vmul.f32 %v134, %v134
  %v137 = vmin.f32 16.0, %v136
  %v138 = vmul.f32 %v137, 2.1237322e-06
  %v139 = vadd.f32 %v138, 0.00028619796
  %v140 = vmul.f32 %v137, %v139
  %v141 = vadd.f32 %v140, 0.0036580483
  %v142 = vmul.f32 %v137, %v141
  %v143 = vadd.f32 %v142, 0.05243302
  %v144 = vmul.f32 %v137, %v143
  %v145 = vadd.f32 %v144, 0.18741608
  %v146 = vmul.f32 %v137, %v145
  %v147 = vadd.f32 %v146, 1.1283791
  %v148 = vmul.f32 %v134, %v147
  %v149 = vmul.f32 %v137, 3.8918573e-05
  %v150 = vadd.f32 %v149, 0.001143296
  %v151 = vmul.f32 %v137, %v150
  %v152 = vadd.f32 %v151, 0.014752088
  %v153 = vmul.f32 %v137, %v152
  %v154 = vadd.f32 %v153, 0.112945676
  %v155 = vmul.f32 %v137, %v154
  %v156 = vadd.f32 %v155, 0.4994258
  %v157 = vmul.f32 %v137, %v156
  %v158 = vadd.f32 %v157, 1.0
  %v159 = vrcp.pop %v158
  %v160 = vmul.f32 %v158, %v159
  %v161 = vsub.f32 1.0, %v160
  %v162 = vmul.f32 %v159, %v161
  %v163 = vadd.f32 %v159, %v162
  %vm164 = vweird.f32 %v158
  %vm165 = vweird.f32 %v159
  %vm166 = vmor %vm164, %vm165
  %v167 = vsel %vm166, %v159, %v163
  %v168 = vand.u32 2147483647, %v158
  %vm169 = vcmp.eq.f32.partialorder %v168, 8.507059e+37
  %v170 = vand.u32 %v158, 2147483648
  %v171 = vor.u32 1.1754944e-38, %v170
  %v172 = vsel %vm169, %v171, %v167
  %v173 = vmul.f32 %v148, %v172
  %v174 = vmin.f32 %v173, 1.0
  %v175 = vmax.f32 %v174, -1.0
  %v176 = vmul.f32 %v135, %v135
  %v177 = vmin.f32 16.0, %v176
  %v178 = vmul.f32 %v177, 2.1237322e-06
  %v179 = vadd.f32 %v178, 0.00028619796
  %v180 = vmul.f32 %v177, %v179
  %v181 = vadd.f32 %v180, 0.0036580483
  %v182 = vmul.f32 %v177, %v181
  %v183 = vadd.f32 %v182, 0.05243302
  %v184 = vmul.f32 %v177, %v183
  %v185 = vadd.f32 %v184, 0.18741608
  %v186 = vmul.f32 %v177, %v185
  %v187 = vadd.f32 %v186, 1.1283791
  %v188 = vmul.f32 %v135, %v187
  %v189 = vmul.f32 %v177, 3.8918573e-05
  %v190 = vadd.f32 %v189, 0.001143296
  %v191 = vmul.f32 %v177, %v190
  %v192 = vadd.f32 %v191, 0.014752088
  %v193 = vmul.f32 %v177, %v192
  %v194 = vadd.f32 %v193, 0.112945676
  %v195 = vmul.f32 %v177, %v194
  %v196 = vadd.f32 %v195, 0.4994258
  %v197 = vmul.f32 %v177, %v196
  %v198 = vadd.f32 %v197, 1.0
  %v199 = vrcp.pop %v198
  %v200 = vmul.f32 %v198, %v199
  %v201 = vsub.f32 1.0, %v200
  %v202 = vmul.f32 %v199, %v201
  %v203 = vadd.f32 %v199, %v202
  %vm204 = vweird.f32 %v198
  %vm205 = vweird.f32 %v199
  %vm206 = vmor %vm204, %vm205
  %v207 = vsel %vm206, %v199, %v203
  %v208 = vand.u32 2147483647, %v198
  %vm209 = vcmp.eq.f32.partialorder %v208, 8.507059e+37
  %v210 = vand.u32 %v198, 2147483648
  %v211 = vor.u32 1.1754944e-38, %v210
  %v212 = vsel %vm209, %v211, %v207
  %v213 = vmul.f32 %v188, %v212
  %v214 = vmin.f32 %v213, 1.0
  %v215 = vmax.f32 %v214, -1.0
  %v216 = vadd.f32 %v175, 1.0
  %v217 = vadd.f32 %v215, 1.0
  %v218 = vmul.f32 %v132, %v216
  %v219 = vmul.f32 %v133, %v217
  %220 = vst [vmem:[%s5] sm:$0xff] %v218
  %221 = vst [vmem:[%s5 + $0x8] sm:$0xff] %v219
  // Predicated region
  $region26: #{block_forward.6} parent=0 // pred_check
    _
  $region27: #{block_forward.6} parent=0 // pred_check_branch
    %223 = sbr.rel (0) target = $region29
  $region28: #{block_forward.6} parent=0 // pred_region
    _
  $region29: #{block_forward.6} parent=0 // pred_fallthru
    _
  // Predicated region
  $region30: #{block_forward.6} parent=0 // pred_check
    _
  $region31: #{block_forward.6} parent=0 // pred_check_branch
    %225 = sbr.rel (0) target = $region33
  $region32: #{block_forward.6} parent=0 // pred_region
    _
  $region33: #{block_forward.6} parent=0 // pred_fallthru
    _

// kernel: block_forward.5
$region0: #{block_forward.5}
  #allocation0 [shape = 'u32[]', space=smem, size = 0x4, offset = 0x4, fixed_abs, tag = 'smem constant byte address 0x4 - core index']
  #allocation1 [shape = 'u32[72,128]{1,0:T(1,128)}', space=vmem, size = 0x9000, scoped, tag = 'internal scratch']
  #allocation2 [shape = 'f32[8,32]{1,0:T(8,128)}', space=vmem, size = 0x1000, scoped, tag = 'scratch operand']
  #allocation3 [shape = 'f32[8,32]{1,0:T(8,128)}', space=vmem, size = 0x1000, scoped, tag = 'scratch operand']
  #allocation4 [shape = 'f32[8,32]{1,0:T(8,128)}', space=vmem, size = 0x1000, scoped, tag = 'scratch operand']
  %s0 = inlined_call_operand.vmem [shape: f32[2,8,32], index: 0, kind: input, shape index: {}]
  %s1 = inlined_call_operand.vmem [shape: f32[2,8,32], index: 1, kind: input, shape index: {}]
  %s2 = inlined_call_operand.vmem [shape: f32[1,32], index: 2, kind: input, shape index: {}]
  %s3 = inlined_call_operand.vmem [shape: f32[1,32], index: 3, kind: input, shape index: {}]
  %s4 = inlined_call_operand.vmem [shape: f32[1,32], index: 4, kind: input, shape index: {}]
  %s5 = inlined_call_operand.vmem [shape: f32[1,32], index: 5, kind: input, shape index: {}]
  %s6 = inlined_call_operand.vmem [shape: f32[4,32,8], index: 6, kind: input, shape index: {}]
  %s7 = inlined_call_operand.vmem [shape: f32[4,32,8], index: 7, kind: input, shape index: {}]
  %s8 = inlined_call_operand.vmem [shape: f32[4,32,8], index: 8, kind: input, shape index: {}]
  %s9 = inlined_call_operand.vmem [shape: f32[4,8,32], index: 9, kind: input, shape index: {}]
  %s10 = inlined_call_operand.vmem [shape: f32[1,32], index: 10, kind: input, shape index: {}]
  %s11 = inlined_call_operand.vmem [shape: f32[2,8,32], index: 11, kind: output, shape index: {}]
  %s12 = sld [smem:[#allocation0]]
  $region85: #{block_forward.5} parent=0
    _
  %s14 = ssub.s32 1, %s12
  %s15 = scalar_select 0, %s14, %s12
  loop: start=0, step=1, limit=10
  $region2: #{block_forward.5} parent=0 // loop_pre_header
    _
  $region3: #{block_forward.5} parent=0 // loop_header
    %s17 = sphi 0, %s21
    %p18 = scmp.ge.s32.totalorder %s17, 10
    %s24 = sphi 0, %s36
    %s25 = sphi 0, %s32
    %s26 = sphi 0, %s24
    %s27 = sphi 0, %s25
    %s28 = sphi 0, %s26
    %s29 = sphi 0, %s27
    %s39 = sphi 0, %s41
    %s42 = sphi 0, %s39
    %s43 = sphi 0, %s42
    %s59 = sphi 0, %s43
    %s65 = sphi 0, %s67
    %s68 = sphi 0, %s65
    %s69 = sphi 0, %s68
    %s85 = sphi 0, %s69
    %s89 = sphi 0, %s89
    %s91 = sphi 0, %s89
    %s92 = sphi 0, %s91
    %s106 = sphi 0, %s92
    %s110 = sphi 0, %s110
    %s112 = sphi 0, %s110
    %s113 = sphi 0, %s112
    %s127 = sphi 0, %s113
    %s131 = sphi 0, %s131
    %s133 = sphi 0, %s131
    %s134 = sphi 0, %s133
    %s148 = sphi 0, %s134
    %s152 = sphi 0, %s152
    %s154 = sphi 0, %s152
    %s155 = sphi 0, %s154
    %s169 = sphi 0, %s155
    %s175 = sphi 0, %s177
    %s178 = sphi 0, %s175
    %s179 = sphi 0, %s178
    %s195 = sphi 0, %s179
    %s201 = sphi 0, %s203
    %s204 = sphi 0, %s201
    %s205 = sphi 0, %s204
    %s221 = sphi 0, %s205
    %s227 = sphi 0, %s229
    %s230 = sphi 0, %s227
    %s231 = sphi 0, %s230
    %s247 = sphi 0, %s231
    %s253 = sphi 0, %s255
    %s256 = sphi 0, %s253
    %s257 = sphi 0, %s256
    %s273 = sphi 0, %s257
    %s277 = sphi 0, %s277
    %s279 = sphi 0, %s277
    %s280 = sphi 0, %s279
    %s294 = sphi 0, %s280
    %s300 = sphi 0, %s302
    %s303 = sphi 0, %s300
    %s304 = sphi 0, %s303
    %s320 = sphi 0, %s304
  $region4: #{block_forward.5} parent=0 // loop_header_branch
    %20 = sbr.rel (%p18) target = $region8
  $region5: #{block_forward.5} parent=0 // loop_body
    %s22 = ssub.s32 %s17, 1
    %s23 = ssub.s32 %s17, 2
    %s30 = sadd.s32 1, %s25
    %p31 = scmp.ge.s32.totalorder %s30, 4
    %s32 = scalar_select %p31, 0, %s30
    %s33 = sadd.s32 1, %s24
    %s34 = scalar_select %p31, %s33, %s24
    %p35 = scmp.ge.s32.totalorder %s34, 2
    %s36 = scalar_select %p35, 0, %s34
    %s37 = ssub.s32 %s24, %s36
    %p38 = scmp.eq.s32.totalorder %s37, 0
    %s40 = sadd.s32 %s39, 1
    %s41 = scalar_select %p38, %s39, %s40
    %p44 = pneg %p38
    %p45 = scmp.eq.s32.totalorder %s17, 7
    %p46 = por %p44, %p45
    %p47 = scmp.ne.s32.totalorder %s39, %s42
    %p48 = scmp.eq.s32.totalorder %s17, 0
    %p49 = por %p47, %p48
    %p50 = scmp.ne.s32.totalorder %s39, %s42
    %p51 = scmp.eq.s32.totalorder %s22, 7
    %p52 = por %p50, %p51
    %p53 = scmp.ne.s32.totalorder %s42, %s43
    %p54 = scmp.eq.s32.totalorder %s22, 0
    %p55 = por %p53, %p54
    %p56 = scmp.ne.s32.totalorder %s42, %s43
    %p57 = scmp.eq.s32.totalorder %s23, 7
    %p58 = por %p56, %p57
    %p60 = scmp.ne.s32.totalorder %s43, %s59
    %p61 = scmp.eq.s32.totalorder %s23, 0
    %p62 = por %p60, %p61
    %s63 = ssub.s32 %s24, %s36
    %p64 = scmp.eq.s32.totalorder %s63, 0
    %s66 = sadd.s32 %s65, 1
    %s67 = scalar_select %p64, %s65, %s66
    %p70 = pneg %p64
    %p71 = scmp.eq.s32.totalorder %s17, 7
    %p72 = por %p70, %p71
    %p73 = scmp.ne.s32.totalorder %s65, %s68
    %p74 = scmp.eq.s32.totalorder %s17, 0
    %p75 = por %p73, %p74
    %p76 = scmp.ne.s32.totalorder %s65, %s68
    %p77 = scmp.eq.s32.totalorder %s22, 7
    %p78 = por %p76, %p77
    %p79 = scmp.ne.s32.totalorder %s68, %s69
    %p80 = scmp.eq.s32.totalorder %s22, 0
    %p81 = por %p79, %p80
    %p82 = scmp.ne.s32.totalorder %s68, %s69
    %p83 = scmp.eq.s32.totalorder %s23, 7
    %p84 = por %p82, %p83
    %p86 = scmp.ne.s32.totalorder %s69, %s85
    %p87 = scmp.eq.s32.totalorder %s23, 0
    %p88 = por %p86, %p87
    %s90 = sadd.s32 %s89, 1
    %p93 = scmp.eq.s32.totalorder %s17, 7
    %p94 = scmp.ne.s32.totalorder %s89, %s91
    %p95 = scmp.eq.s32.totalorder %s17, 0
    %p96 = por %p94, %p95
    %p97 = scmp.ne.s32.totalorder %s89, %s91
    %p98 = scmp.eq.s32.totalorder %s22, 7
    %p99 = por %p97, %p98
    %p100 = scmp.ne.s32.totalorder %s91, %s92
    %p101 = scmp.eq.s32.totalorder %s22, 0
    %p102 = por %p100, %p101
    %p103 = scmp.ne.s32.totalorder %s91, %s92
    %p104 = scmp.eq.s32.totalorder %s23, 7
    %p105 = por %p103, %p104
    %p107 = scmp.ne.s32.totalorder %s92, %s106
    %p108 = scmp.eq.s32.totalorder %s23, 0
    %p109 = por %p107, %p108
    %s111 = sadd.s32 %s110, 1
    %p114 = scmp.eq.s32.totalorder %s17, 7
    %p115 = scmp.ne.s32.totalorder %s110, %s112
    %p116 = scmp.eq.s32.totalorder %s17, 0
    %p117 = por %p115, %p116
    %p118 = scmp.ne.s32.totalorder %s110, %s112
    %p119 = scmp.eq.s32.totalorder %s22, 7
    %p120 = por %p118, %p119
    %p121 = scmp.ne.s32.totalorder %s112, %s113
    %p122 = scmp.eq.s32.totalorder %s22, 0
    %p123 = por %p121, %p122
    %p124 = scmp.ne.s32.totalorder %s112, %s113
    %p125 = scmp.eq.s32.totalorder %s23, 7
    %p126 = por %p124, %p125
    %p128 = scmp.ne.s32.totalorder %s113, %s127
    %p129 = scmp.eq.s32.totalorder %s23, 0
    %p130 = por %p128, %p129
    %s132 = sadd.s32 %s131, 1
    %p135 = scmp.eq.s32.totalorder %s17, 7
    %p136 = scmp.ne.s32.totalorder %s131, %s133
    %p137 = scmp.eq.s32.totalorder %s17, 0
    %p138 = por %p136, %p137
    %p139 = scmp.ne.s32.totalorder %s131, %s133
    %p140 = scmp.eq.s32.totalorder %s22, 7
    %p141 = por %p139, %p140
    %p142 = scmp.ne.s32.totalorder %s133, %s134
    %p143 = scmp.eq.s32.totalorder %s22, 0
    %p144 = por %p142, %p143
    %p145 = scmp.ne.s32.totalorder %s133, %s134
    %p146 = scmp.eq.s32.totalorder %s23, 7
    %p147 = por %p145, %p146
    %p149 = scmp.ne.s32.totalorder %s134, %s148
    %p150 = scmp.eq.s32.totalorder %s23, 0
    %p151 = por %p149, %p150
    %s153 = sadd.s32 %s152, 1
    %p156 = scmp.eq.s32.totalorder %s17, 7
    %p157 = scmp.ne.s32.totalorder %s152, %s154
    %p158 = scmp.eq.s32.totalorder %s17, 0
    %p159 = por %p157, %p158
    %p160 = scmp.ne.s32.totalorder %s152, %s154
    %p161 = scmp.eq.s32.totalorder %s22, 7
    %p162 = por %p160, %p161
    %p163 = scmp.ne.s32.totalorder %s154, %s155
    %p164 = scmp.eq.s32.totalorder %s22, 0
    %p165 = por %p163, %p164
    %p166 = scmp.ne.s32.totalorder %s154, %s155
    %p167 = scmp.eq.s32.totalorder %s23, 7
    %p168 = por %p166, %p167
    %p170 = scmp.ne.s32.totalorder %s155, %s169
    %p171 = scmp.eq.s32.totalorder %s23, 0
    %p172 = por %p170, %p171
    %s173 = ssub.s32 %s25, %s32
    %p174 = scmp.eq.s32.totalorder %s173, 0
    %s176 = sadd.s32 %s175, 1
    %s177 = scalar_select %p174, %s175, %s176
    %p180 = pneg %p174
    %p181 = scmp.eq.s32.totalorder %s17, 7
    %p182 = por %p180, %p181
    %p183 = scmp.ne.s32.totalorder %s175, %s178
    %p184 = scmp.eq.s32.totalorder %s17, 0
    %p185 = por %p183, %p184
    %p186 = scmp.ne.s32.totalorder %s175, %s178
    %p187 = scmp.eq.s32.totalorder %s22, 7
    %p188 = por %p186, %p187
    %p189 = scmp.ne.s32.totalorder %s178, %s179
    %p190 = scmp.eq.s32.totalorder %s22, 0
    %p191 = por %p189, %p190
    %p192 = scmp.ne.s32.totalorder %s178, %s179
    %p193 = scmp.eq.s32.totalorder %s23, 7
    %p194 = por %p192, %p193
    %p196 = scmp.ne.s32.totalorder %s179, %s195
    %p197 = scmp.eq.s32.totalorder %s23, 0
    %p198 = por %p196, %p197
    %s199 = ssub.s32 %s25, %s32
    %p200 = scmp.eq.s32.totalorder %s199, 0
    %s202 = sadd.s32 %s201, 1
    %s203 = scalar_select %p200, %s201, %s202
    %p206 = pneg %p200
    %p207 = scmp.eq.s32.totalorder %s17, 7
    %p208 = por %p206, %p207
    %p209 = scmp.ne.s32.totalorder %s201, %s204
    %p210 = scmp.eq.s32.totalorder %s17, 0
    %p211 = por %p209, %p210
    %p212 = scmp.ne.s32.totalorder %s201, %s204
    %p213 = scmp.eq.s32.totalorder %s22, 7
    %p214 = por %p212, %p213
    %p215 = scmp.ne.s32.totalorder %s204, %s205
    %p216 = scmp.eq.s32.totalorder %s22, 0
    %p217 = por %p215, %p216
    %p218 = scmp.ne.s32.totalorder %s204, %s205
    %p219 = scmp.eq.s32.totalorder %s23, 7
    %p220 = por %p218, %p219
    %p222 = scmp.ne.s32.totalorder %s205, %s221
    %p223 = scmp.eq.s32.totalorder %s23, 0
    %p224 = por %p222, %p223
    %s225 = ssub.s32 %s25, %s32
    %p226 = scmp.eq.s32.totalorder %s225, 0
    %s228 = sadd.s32 %s227, 1
    %s229 = scalar_select %p226, %s227, %s228
    %p232 = pneg %p226
    %p233 = scmp.eq.s32.totalorder %s17, 7
    %p234 = por %p232, %p233
    %p235 = scmp.ne.s32.totalorder %s227, %s230
    %p236 = scmp.eq.s32.totalorder %s17, 0
    %p237 = por %p235, %p236
    %p238 = scmp.ne.s32.totalorder %s227, %s230
    %p239 = scmp.eq.s32.totalorder %s22, 7
    %p240 = por %p238, %p239
    %p241 = scmp.ne.s32.totalorder %s230, %s231
    %p242 = scmp.eq.s32.totalorder %s22, 0
    %p243 = por %p241, %p242
    %p244 = scmp.ne.s32.totalorder %s230, %s231
    %p245 = scmp.eq.s32.totalorder %s23, 7
    %p246 = por %p244, %p245
    %p248 = scmp.ne.s32.totalorder %s231, %s247
    %p249 = scmp.eq.s32.totalorder %s23, 0
    %p250 = por %p248, %p249
    %s251 = ssub.s32 %s25, %s32
    %p252 = scmp.eq.s32.totalorder %s251, 0
    %s254 = sadd.s32 %s253, 1
    %s255 = scalar_select %p252, %s253, %s254
    %p258 = pneg %p252
    %p259 = scmp.eq.s32.totalorder %s17, 7
    %p260 = por %p258, %p259
    %p261 = scmp.ne.s32.totalorder %s253, %s256
    %p262 = scmp.eq.s32.totalorder %s17, 0
    %p263 = por %p261, %p262
    %p264 = scmp.ne.s32.totalorder %s253, %s256
    %p265 = scmp.eq.s32.totalorder %s22, 7
    %p266 = por %p264, %p265
    %p267 = scmp.ne.s32.totalorder %s256, %s257
    %p268 = scmp.eq.s32.totalorder %s22, 0
    %p269 = por %p267, %p268
    %p270 = scmp.ne.s32.totalorder %s256, %s257
    %p271 = scmp.eq.s32.totalorder %s23, 7
    %p272 = por %p270, %p271
    %p274 = scmp.ne.s32.totalorder %s257, %s273
    %p275 = scmp.eq.s32.totalorder %s23, 0
    %p276 = por %p274, %p275
    %s278 = sadd.s32 %s277, 1
    %p281 = scmp.eq.s32.totalorder %s17, 7
    %p282 = scmp.ne.s32.totalorder %s277, %s279
    %p283 = scmp.eq.s32.totalorder %s17, 0
    %p284 = por %p282, %p283
    %p285 = scmp.ne.s32.totalorder %s277, %s279
    %p286 = scmp.eq.s32.totalorder %s22, 7
    %p287 = por %p285, %p286
    %p288 = scmp.ne.s32.totalorder %s279, %s280
    %p289 = scmp.eq.s32.totalorder %s22, 0
    %p290 = por %p288, %p289
    %p291 = scmp.ne.s32.totalorder %s279, %s280
    %p292 = scmp.eq.s32.totalorder %s23, 7
    %p293 = por %p291, %p292
    %p295 = scmp.ne.s32.totalorder %s280, %s294
    %p296 = scmp.eq.s32.totalorder %s23, 0
    %p297 = por %p295, %p296
    %s298 = ssub.s32 %s24, %s36
    %p299 = scmp.eq.s32.totalorder %s298, 0
    %s301 = sadd.s32 %s300, 1
    %s302 = scalar_select %p299, %s300, %s301
    %p305 = pneg %p299
    %p306 = scmp.eq.s32.totalorder %s17, 7
    %p307 = por %p305, %p306
    %p308 = scmp.ne.s32.totalorder %s300, %s303
    %p309 = scmp.eq.s32.totalorder %s17, 0
    %p310 = por %p308, %p309
    %p311 = scmp.ne.s32.totalorder %s300, %s303
    %p312 = scmp.eq.s32.totalorder %s22, 7
    %p313 = por %p311, %p312
    %p314 = scmp.ne.s32.totalorder %s303, %s304
    %p315 = scmp.eq.s32.totalorder %s22, 0
    %p316 = por %p314, %p315
    %p317 = scmp.ne.s32.totalorder %s303, %s304
    %p318 = scmp.eq.s32.totalorder %s23, 7
    %p319 = por %p317, %p318
    %p321 = scmp.ne.s32.totalorder %s304, %s320
    %p322 = scmp.eq.s32.totalorder %s23, 0
    %p323 = por %p321, %p322
    %p324 = scmp.le.s32.totalorder 1, %s17
    %p325 = scmp.lt.s32.totalorder %s17, 9
    %p326 = pnand %p324, %p325
    %p327 = pneg %p326
    // Predicated region
    $region9: #{block_forward.5} parent=5 // pred_check
      _
    $region10: #{block_forward.5} parent=5 // pred_check_branch
      %329 = sbr.rel (%p326) target = $region12
    $region11: #{block_forward.5} parent=5 // pred_region
      %s330 = ssub.s32 %s17, 1
      // Predicated region
      $region13: #{block_forward.5} parent=11 // pred_check
        %p331 = pneg %p102
      $region14: #{block_forward.5} parent=11 // pred_check_branch
        %333 = sbr.rel (%p331) target = $region16
      $region15: #{block_forward.5} parent=11 // pred_region
        _
      $region16: #{block_forward.5} parent=11 // pred_fallthru
        _
      // Predicated region
      $region17: #{block_forward.5} parent=11 // pred_check
        %p334 = pneg %p123
      $region18: #{block_forward.5} parent=11 // pred_check_branch
        %336 = sbr.rel (%p334) target = $region20
      $region19: #{block_forward.5} parent=11 // pred_region
        _
      $region20: #{block_forward.5} parent=11 // pred_fallthru
        _
      // Predicated region
      $region21: #{block_forward.5} parent=11 // pred_check
        %p337 = pneg %p144
      $region22: #{block_forward.5} parent=11 // pred_check_branch
        %339 = sbr.rel (%p337) target = $region24
      $region23: #{block_forward.5} parent=11 // pred_region
        _
      $region24: #{block_forward.5} parent=11 // pred_fallthru
        _
      // Predicated region
      $region25: #{block_forward.5} parent=11 // pred_check
        %p340 = pneg %p165
      $region26: #{block_forward.5} parent=11 // pred_check_branch
        %342 = sbr.rel (%p340) target = $region28
      $region27: #{block_forward.5} parent=11 // pred_region
        _
      $region28: #{block_forward.5} parent=11 // pred_fallthru
        _
      // Predicated region
      $region29: #{block_forward.5} parent=11 // pred_check
        %p343 = pneg %p290
      $region30: #{block_forward.5} parent=11 // pred_check_branch
        %345 = sbr.rel (%p343) target = $region32
      $region31: #{block_forward.5} parent=11 // pred_region
        _
      $region32: #{block_forward.5} parent=11 // pred_fallthru
        _
    $region12: #{block_forward.5} parent=5 // pred_fallthru
      _
    %p346 = scmp.lt.s32.totalorder %s17, 8
    // Predicated region
    $region33: #{block_forward.5} parent=5 // pred_check
      %p347 = pneg %p346
    $region34: #{block_forward.5} parent=5 // pred_check_branch
      %349 = sbr.rel (%p347) target = $region36
    $region35: #{block_forward.5} parent=5 // pred_region
      // Predicated region
      $region37: #{block_forward.5} parent=35 // pred_check
        %p350 = pneg %p49
      $region38: #{block_forward.5} parent=35 // pred_check_branch
        %352 = sbr.rel (%p350) target = $region40
      $region39: #{block_forward.5} parent=35 // pred_region
        %p353 = scmp.lt.s32.totalorder %s24, 1
        %s354 = scalar_select %p353, %s24, 1
        %s355 = smul.addr %s354, 8
        %s356 = scalar_lea.vmem %s0, %s355
      $region40: #{block_forward.5} parent=35 // pred_fallthru
        _
      // Predicated region
      $region41: #{block_forward.5} parent=35 // pred_check
        %p357 = pneg %p75
      $region42: #{block_forward.5} parent=35 // pred_check_branch
        %359 = sbr.rel (%p357) target = $region44
      $region43: #{block_forward.5} parent=35 // pred_region
        %p360 = scmp.lt.s32.totalorder %s24, 1
        %s361 = scalar_select %p360, %s24, 1
        %s362 = smul.addr %s361, 8
        %s363 = scalar_lea.vmem %s1, %s362
      $region44: #{block_forward.5} parent=35 // pred_fallthru
        _
      // Predicated region
      $region45: #{block_forward.5} parent=35 // pred_check
        %p364 = pneg %p185
      $region46: #{block_forward.5} parent=35 // pred_check_branch
        %366 = sbr.rel (%p364) target = $region48
      $region47: #{block_forward.5} parent=35 // pred_region
        %p367 = scmp.lt.s32.totalorder %s25, 3
        %s368 = scalar_select %p367, %s25, 3
        %s369 = smul.addr %s368, 4
        %s370 = smul.addr %s369, 8
        %s371 = scalar_lea.vmem %s6, %s370
      $region48: #{block_forward.5} parent=35 // pred_fallthru
        _
      // Predicated region
      $region49: #{block_forward.5} parent=35 // pred_check
        %p372 = pneg %p211
      $region50: #{block_forward.5} parent=35 // pred_check_branch
        %374 = sbr.rel (%p372) target = $region52
      $region51: #{block_forward.5} parent=35 // pred_region
        %p375 = scmp.lt.s32.totalorder %s25, 3
        %s376 = scalar_select %p375, %s25, 3
        %s377 = smul.addr %s376, 4
        %s378 = smul.addr %s377, 8
        %s379 = scalar_lea.vmem %s7, %s378
      $region52: #{block_forward.5} parent=35 // pred_fallthru
        _
      // Predicated region
      $region53: #{block_forward.5} parent=35 // pred_check
        %p380 = pneg %p237
      $region54: #{block_forward.5} parent=35 // pred_check_branch
        %382 = sbr.rel (%p380) target = $region56
      $region55: #{block_forward.5} parent=35 // pred_region
        %p383 = scmp.lt.s32.totalorder %s25, 3
        %s384 = scalar_select %p383, %s25, 3
        %s385 = smul.addr %s384, 4
        %s386 = smul.addr %s385, 8
        %s387 = scalar_lea.vmem %s8, %s386
      $region56: #{block_forward.5} parent=35 // pred_fallthru
        _
      // Predicated region
      $region57: #{block_forward.5} parent=35 // pred_check
        %p388 = pneg %p263
      $region58: #{block_forward.5} parent=35 // pred_check_branch
        %390 = sbr.rel (%p388) target = $region60
      $region59: #{block_forward.5} parent=35 // pred_region
        %p391 = scmp.lt.s32.totalorder %s25, 3
        %s392 = scalar_select %p391, %s25, 3
        %s393 = smul.addr %s392, 8
        %s394 = scalar_lea.vmem %s9, %s393
      $region60: #{block_forward.5} parent=35 // pred_fallthru
        _
    $region36: #{block_forward.5} parent=5 // pred_fallthru
      _
    %p395 = scmp.le.s32.totalorder 1, %s17
    %p396 = scmp.lt.s32.totalorder %s17, 9
    %p397 = pnand %p395, %p396
    %p398 = pneg %p397
    // Predicated region
    $region61: #{block_forward.5} parent=5 // pred_check
      _
    $region62: #{block_forward.5} parent=5 // pred_check_branch
      %400 = sbr.rel (%p397) target = $region64
    $region63: #{block_forward.5} parent=5 // pred_region
      %s401 = ssub.s32 %s17, 1
      %p402 = scmp.lt.s32.totalorder %s26, 1
      %s403 = scalar_select %p402, %s26, 1
      %s404 = smul.addr %s403, 8
      %s405 = scalar_lea.vmem %s0, %s404
      %p406 = pneg %p55
      %p407 = pneg %p52
      %p408 = scmp.lt.s32.totalorder %s26, 1
      %s409 = scalar_select %p408, %s26, 1
      %s410 = smul.addr %s409, 8
      %s411 = scalar_lea.vmem %s1, %s410
      %p412 = pneg %p81
      %p413 = pneg %p78
      %p414 = pneg %p102
      %p415 = pneg %p99
      %p416 = pneg %p123
      %p417 = pneg %p120
      %p418 = pneg %p144
      %p419 = pneg %p141
      %p420 = pneg %p165
      %p421 = pneg %p162
      %p422 = scmp.lt.s32.totalorder %s27, 3
      %s423 = scalar_select %p422, %s27, 3
      %s424 = smul.addr %s423, 4
      %s425 = smul.addr %s424, 8
      %s426 = scalar_lea.vmem %s6, %s425
      %p427 = pneg %p191
      %p428 = pneg %p188
      %p429 = scmp.lt.s32.totalorder %s27, 3
      %s430 = scalar_select %p429, %s27, 3
      %s431 = smul.addr %s430, 4
      %s432 = smul.addr %s431, 8
      %s433 = scalar_lea.vmem %s7, %s432
      %p434 = pneg %p217
      %p435 = pneg %p214
      %p436 = scmp.lt.s32.totalorder %s27, 3
      %s437 = scalar_select %p436, %s27, 3
      %s438 = smul.addr %s437, 4
      %s439 = smul.addr %s438, 8
      %s440 = scalar_lea.vmem %s8, %s439
      %p441 = pneg %p243
      %p442 = pneg %p240
      %p443 = scmp.lt.s32.totalorder %s27, 3
      %s444 = scalar_select %p443, %s27, 3
      %s445 = smul.addr %s444, 8
      %s446 = scalar_lea.vmem %s9, %s445
      %p447 = pneg %p269
      %p448 = pneg %p266
      %p449 = pneg %p290
      %p450 = pneg %p287
      %p451 = pneg %p316
      %p452 = pneg %p313
      %p453 = scmp.lt.s32.totalorder %s26, 1
      %s454 = scalar_select %p453, %s26, 1
      %s455 = smul.addr %s454, 8
      %s456 = scalar_lea.vmem %s11, %s455
      %p457 = scmp.lt.s32.totalorder %s26, 1
      %s458 = scalar_select %p457, %s26, 1
      %s459 = smul.addr %s458, 8
      %s460 = scalar_lea.vmem %s0, %s459
      %p461 = scmp.lt.s32.totalorder %s26, 1
      %s462 = scalar_select %p461, %s26, 1
      %s463 = smul.addr %s462, 8
      %s464 = scalar_lea.vmem %s1, %s463
      %p465 = scmp.lt.s32.totalorder %s27, 3
      %s466 = scalar_select %p465, %s27, 3
      %s467 = smul.addr %s466, 4
      %s468 = smul.addr %s467, 8
      %s469 = scalar_lea.vmem %s6, %s468
      %p470 = scmp.lt.s32.totalorder %s27, 3
      %s471 = scalar_select %p470, %s27, 3
      %s472 = smul.addr %s471, 4
      %s473 = smul.addr %s472, 8
      %s474 = scalar_lea.vmem %s7, %s473
      %p475 = scmp.lt.s32.totalorder %s27, 3
      %s476 = scalar_select %p475, %s27, 3
      %s477 = smul.addr %s476, 4
      %s478 = smul.addr %s477, 8
      %s479 = scalar_lea.vmem %s8, %s478
      %p480 = scmp.lt.s32.totalorder %s27, 3
      %s481 = scalar_select %p480, %s27, 3
      %s482 = smul.addr %s481, 8
      %s483 = scalar_lea.vmem %s9, %s482
      %p484 = scmp.lt.s32.totalorder %s26, 1
      %s485 = scalar_select %p484, %s26, 1
      %s486 = smul.addr %s485, 8
      %s487 = scalar_lea.vmem %s11, %s486
      %p488 = scmp.eq.s32.totalorder %s27, 0
      // Predicated region
      $region65: #{block_forward.5} parent=63 // pred_check
        %p489 = pneg %p488
      $region66: #{block_forward.5} parent=63 // pred_check_branch
        %491 = sbr.rel (%p489) target = $region68
      $region67: #{block_forward.5} parent=63 // pred_region
        %v492 = vld [vmem:[%s460] sm:$0xff]
        %v493 = vld [vmem:[%s2] sm:$0x1]
        %v494 = vld [vmem:[%s3] sm:$0x1]
        %vm495 = vcmask 261120
        %v496 = vsel %vm495, %v492, 0.0
        %497 = vadd.xlane.f32.xlu0 %v496
        %v498 = vpop.xlane.xlu0 %497
        %v499 = vrcp.pop 32.0
        %v500 = vmul.f32 32.0, %v499
        %v501 = vsub.f32 1.0, %v500
        %v502 = vmul.f32 %v499, %v501
        %v503 = vadd.f32 %v499, %v502
        %vm504 = vweird.f32 %v499
        %v505 = vsel %vm504, %v499, %v503
        %v506 = vmul.f32 %v498, %v505
        %v507 = vsub.f32 %v492, %v506
        %v508 = vmul.f32 %v507, %v507
        %v509 = vsel %vm495, %v508, 0.0
        %510 = vadd.xlane.f32.xlu0 %v509
        %v511 = vpop.xlane.xlu0 %510
        %v512 = vmul.f32 %v511, %v505
        %v513 = vadd.f32 %v512, 1e-05
        %v514 = vrsqrt.pop %v513
        %v515 = vmul.f32 %v514, %v513
        %v516 = vmul.f32 %v515, %v514
        %v517 = vmul.f32 0.5, %v516
        %v518 = vsub.f32 1.5, %v517
        %v519 = vmul.f32 %v514, %v518
        %vm520 = vweird.f32 %v513
        %vm521 = vweird.f32 %v514
        %vm522 = vmor %vm520, %vm521
        %v523 = vsel %vm522, %v514, %v519
        %v524 = vmul.f32 %v507, %v523
        %v526 = vperm.slane %v493, 0
        %v528 = vmul.f32 %v524, %v526
        %v530 = vperm.slane %v494, 0
        %v532 = vadd.f32 %v528, %v530
        %533 = vst.msk [vmem:[#allocation2] sm:$0xff] %vm495, %v532
        %v534 = vld [vmem:[%s464] sm:$0xff]
        %v535 = vld [vmem:[%s4] sm:$0x1]
        %v536 = vld [vmem:[%s5] sm:$0x1]
        %v537 = vsel %vm495, %v534, 0.0
        %538 = vadd.xlane.f32.xlu0 %v537
        %v539 = vpop.xlane.xlu0 %538
        %v540 = vmul.f32 %v539, %v505
        %v541 = vsub.f32 %v534, %v540
        %v542 = vmul.f32 %v541, %v541
        %v543 = vsel %vm495, %v542, 0.0
        %544 = vadd.xlane.f32.xlu0 %v543
        %v545 = vpop.xlane.xlu0 %544
        %v546 = vmul.f32 %v545, %v505
        %v547 = vadd.f32 %v546, 1e-05
        %v548 = vrsqrt.pop %v547
        %v549 = vmul.f32 %v548, %v547
        %v550 = vmul.f32 %v549, %v548
        %v551 = vmul.f32 0.5, %v550
        %v552 = vsub.f32 1.5, %v551
        %v553 = vmul.f32 %v548, %v552
        %vm554 = vweird.f32 %v547
        %vm555 = vweird.f32 %v548
        %vm556 = vmor %vm554, %vm555
        %v557 = vsel %vm556, %v548, %v553
        %v558 = vmul.f32 %v541, %v557
        %v560 = vperm.slane %v535, 0
        %v562 = vmul.f32 %v558, %v560
        %v564 = vperm.slane %v536, 0
        %v566 = vadd.f32 %v562, %v564
        %567 = vst.msk [vmem:[#allocation3] sm:$0xff] %vm495, %v566
        %v568 = vld [vmem:[%s10] sm:$0x1]
        %v570 = vperm.slane %v568, 0
        %v572 = vadd.f32 %v492, %v570
        %573 = vst.msk [vmem:[#allocation4] sm:$0xff] %vm495, %v572
      $region68: #{block_forward.5} parent=63 // pred_fallthru
        _
      %v574 = vld [vmem:[#allocation2] sm:$0xff]
      %v575 = vld [vmem:[%s469] sm:$0xff]
      %v576 = vld [vmem:[%s469 + $0x8] sm:$0xff]
      %v577 = vld [vmem:[%s469 + $0x10] sm:$0xff]
      %v578 = vld [vmem:[%s469 + $0x18] sm:$0xff]
      %vm579 = vcmask 261120
      %v581 = vsel %vm579, %v574, 0
      %583 = vmatpush.msra.mxu0 0.0
      %584 = vmatpush.msra.mxu0 0.0
      %585 = vmatpush.msra.mxu0 0.0
      %586 = vmatpush.msra.mxu0 0.0
      %587 = vmatpush.msra.mxu0 0.0
      %588 = vmatpush.msra.mxu0 0.0
      %589 = vmatpush.msra.mxu0 0.0
      %590 = vmatpush.msra.mxu0 0.0
      %591 = vmatpush.msra.mxu0 0.0
      %592 = vmatpush.msra.mxu0 0.0
      %593 = vmatpush.msra.mxu0 0.0
      %594 = vmatpush.msra.mxu0 0.0
      %595 = vmatpush.msra.mxu0 %v578
      %596 = vmatpush.msra.mxu0 %v577
      %597 = vmatpush.msra.mxu0 %v576
      %598 = vmatpush.msra.mxu0 %v575
      %599 = vmatmul.f32.gmra.mxu0 %v581
      %v600 = vpop.f32.mrf.mxu0
      %v601 = vadd.f32 0.0, %v600
      %602 = vdwg.mxu0
      %v603 = vld [vmem:[#allocation3] sm:$0xff]
      %v604 = vld [vmem:[%s474] sm:$0xff]
      %v605 = vld [vmem:[%s474 + $0x8] sm:$0xff]
      %v606 = vld [vmem:[%s474 + $0x10] sm:$0xff]
      %v607 = vld [vmem:[%s474 + $0x18] sm:$0xff]
      %v609 = vsel %vm579, %v603, 0
      %611 = vmatpush.msra.mxu0 0.0
      %612 = vmatpush.msra.mxu0 0.0
      %613 = vmatpush.msra.mxu0 0.0
      %614 = vmatpush.msra.mxu0 0.0
      %615 = vmatpush.msra.mxu0 0.0
      %616 = vmatpush.msra.mxu0 0.0
      %617 = vmatpush.msra.mxu0 0.0
      %618 = vmatpush.msra.mxu0 0.0
      %619 = vmatpush.msra.mxu0 0.0
      %620 = vmatpush.msra.mxu0 0.0
      %621 = vmatpush.msra.mxu0 0.0
      %622 = vmatpush.msra.mxu0 0.0
      %623 = vmatpush.msra.mxu0 %v607
      %624 = vmatpush.msra.mxu0 %v606
      %625 = vmatpush.msra.mxu0 %v605
      %626 = vmatpush.msra.mxu0 %v604
      %627 = vmatmul.f32.gmra.mxu0 %v609
      %v628 = vpop.f32.mrf.mxu0
      %v629 = vadd.f32 0.0, %v628
      %630 = vdwg.mxu0
      %v631 = vld [vmem:[%s479] sm:$0xff]
      %v632 = vld [vmem:[%s479 + $0x8] sm:$0xff]
      %v633 = vld [vmem:[%s479 + $0x10] sm:$0xff]
      %v634 = vld [vmem:[%s479 + $0x18] sm:$0xff]
      %635 = vmatpush.msra.mxu0 0.0
      %636 = vmatpush.msra.mxu0 0.0
      %637 = vmatpush.msra.mxu0 0.0
      %638 = vmatpush.msra.mxu0 0.0
      %639 = vmatpush.msra.mxu0 0.0
      %640 = vmatpush.msra.mxu0 0.0
      %641 = vmatpush.msra.mxu0 0.0
      %642 = vmatpush.msra.mxu0 0.0
      %643 = vmatpush.msra.mxu0 0.0
      %644 = vmatpush.msra.mxu0 0.0
      %645 = vmatpush.msra.mxu0 0.0
      %646 = vmatpush.msra.mxu0 0.0
      %647 = vmatpush.msra.mxu0 %v634
      %648 = vmatpush.msra.mxu0 %v633
      %649 = vmatpush.msra.mxu0 %v632
      %650 = vmatpush.msra.mxu0 %v631
      %651 = vmatmul.f32.gmra.mxu0 %v609
      %v652 = vpop.f32.mrf.mxu0
      %v653 = vadd.f32 0.0, %v652
      %654 = vdwg.mxu0
      %vm655 = vcmask 64512
      %v657 = vsel %vm655, %v601, 0
      %v660 = vsel %vm655, %v629, 0
      %662 = vmatpush.xpose.msra.mxu0 0.0
      %663 = vmatpush.xpose.msra.mxu0 0.0
      %664 = vmatpush.xpose.msra.mxu0 0.0
      %665 = vmatpush.xpose.msra.mxu0 0.0
      %666 = vmatpush.xpose.msra.mxu0 0.0
      %667 = vmatpush.xpose.msra.mxu0 0.0
      %668 = vmatpush.xpose.msra.mxu0 0.0
      %669 = vmatpush.xpose.msra.mxu0 0.0
      %670 = vmatpush.xpose.msra.mxu0 0.0
      %671 = vmatpush.xpose.msra.mxu0 0.0
      %672 = vmatpush.xpose.msra.mxu0 0.0
      %673 = vmatpush.xpose.msra.mxu0 0.0
      %674 = vmatpush.xpose.msra.mxu0 0.0
      %675 = vmatpush.xpose.msra.mxu0 0.0
      %676 = vmatpush.xpose.msra.mxu0 0.0
      %677 = vmatpush.xpose.msra.mxu0 %v660
      %678 = vmatmul.f32.gmra.mxu0 %v657
      %v679 = vpop.f32.mrf.mxu0
      %v680 = vadd.f32 0.0, %v679
      %681 = vdwg.mxu0
      %v682 = vsel %vm655, %v680, -inf
      %683 = vmax.xlane.f32.xlu0 %v682
      %v684 = vpop.xlane.xlu0 %683
      %v685 = vsub.f32 %v680, %v684
      %v686 = vmul.f32 %v685, 1.442695
      %v687 = vpow.pop %v686
      %v688 = vsel %vm655, %v687, 0.0
      %689 = vadd.xlane.f32.xlu0 %v688
      %v690 = vpop.xlane.xlu0 %689
      %v691 = vrcp.pop %v690
      %v692 = vmul.f32 %v687, %v691
      %v694 = vsel %vm655, %v692, 0
      %696 = vmatpush.msra.mxu0 0.0
      %697 = vmatpush.msra.mxu0 0.0
      %698 = vmatpush.msra.mxu0 0.0
      %699 = vmatpush.msra.mxu0 0.0
      %700 = vmatpush.msra.mxu0 0.0
      %701 = vmatpush.msra.mxu0 0.0
      %702 = vmatpush.msra.mxu0 0.0
      %703 = vmatpush.msra.mxu0 0.0
      %704 = vmatpush.msra.mxu0 0.0
      %705 = vmatpush.msra.mxu0 0.0
      %706 = vmatpush.msra.mxu0 0.0
      %707 = vmatpush.msra.mxu0 0.0
      %708 = vmatpush.msra.mxu0 0.0
      %709 = vmatpush.msra.mxu0 0.0
      %710 = vmatpush.msra.mxu0 0.0
      %711 = vmatpush.msra.mxu0 %v653
      %712 = vmatmul.f32.gmra.mxu0 %v694
      %v713 = vpop.f32.mrf.mxu0
      %v714 = vadd.f32 0.0, %v713
      %715 = vdwg.mxu0
      %v716 = vld [vmem:[#allocation4] sm:$0xff]
      %v717 = vld [vmem:[%s483] sm:$0xff]
      %v719 = vsel %vm655, %v714, 0
      %721 = vmatpush.msra.mxu0 0.0
      %722 = vmatpush.msra.mxu0 0.0
      %723 = vmatpush.msra.mxu0 0.0
      %724 = vmatpush.msra.mxu0 0.0
      %725 = vmatpush.msra.mxu0 0.0
      %726 = vmatpush.msra.mxu0 0.0
      %727 = vmatpush.msra.mxu0 0.0
      %728 = vmatpush.msra.mxu0 0.0
      %729 = vmatpush.msra.mxu0 0.0
      %730 = vmatpush.msra.mxu0 0.0
      %731 = vmatpush.msra.mxu0 0.0
      %732 = vmatpush.msra.mxu0 0.0
      %733 = vmatpush.msra.mxu0 0.0
      %734 = vmatpush.msra.mxu0 0.0
      %735 = vmatpush.msra.mxu0 0.0
      %736 = vmatpush.msra.mxu0 %v717
      %737 = vmatmul.f32.gmra.mxu0 %v719
      %v738 = vpop.f32.mrf.mxu0
      %v739 = vadd.f32 0.0, %v738
      %740 = vdwg.mxu0
      %v741 = vadd.f32 %v716, %v739
      %742 = vst.msk [vmem:[#allocation4] sm:$0xff] %vm579, %v741
      %p743 = scmp.eq.s32.totalorder %s27, 3
      // Predicated region
      $region69: #{block_forward.5} parent=63 // pred_check
        %p744 = pneg %p743
      $region70: #{block_forward.5} parent=63 // pred_check_branch
        %746 = sbr.rel (%p744) target = $region72
      $region71: #{block_forward.5} parent=63 // pred_region
        %v747 = vld [vmem:[#allocation4] sm:$0xff]
        %748 = vst.msk [vmem:[%s487] sm:$0xff] %vm579, %v747
      $region72: #{block_forward.5} parent=63 // pred_fallthru
        _
      %p749 = scmp.lt.s32.totalorder %s26, 1
      %s750 = scalar_select %p749, %s26, 1
      %s751 = smul.addr %s750, 8
      %s752 = scalar_lea.vmem %s11, %s751
      // Predicated region
      $region73: #{block_forward.5} parent=63 // pred_check
        %p753 = pneg %p313
      $region74: #{block_forward.5} parent=63 // pred_check_branch
        %755 = sbr.rel (%p753) target = $region76
      $region75: #{block_forward.5} parent=63 // pred_region
        _
      $region76: #{block_forward.5} parent=63 // pred_fallthru
        _
    $region64: #{block_forward.5} parent=5 // pred_fallthru
      _
    %p756 = scmp.le.s32.totalorder 2, %s17
    // Predicated region
    $region77: #{block_forward.5} parent=5 // pred_check
      %p757 = pneg %p756
    $region78: #{block_forward.5} parent=5 // pred_check_branch
      %759 = sbr.rel (%p757) target = $region80
    $region79: #{block_forward.5} parent=5 // pred_region
      %s760 = ssub.s32 %s17, 2
      // Predicated region
      $region81: #{block_forward.5} parent=79 // pred_check
        %p761 = pneg %p319
      $region82: #{block_forward.5} parent=79 // pred_check_branch
        %763 = sbr.rel (%p761) target = $region84
      $region83: #{block_forward.5} parent=79 // pred_region
        %p764 = scmp.lt.s32.totalorder %s28, 1
        %s765 = scalar_select %p764, %s28, 1
        %s766 = smul.addr %s765, 8
        %s767 = scalar_lea.vmem %s11, %s766
      $region84: #{block_forward.5} parent=79 // pred_fallthru
        _
    $region80: #{block_forward.5} parent=5 // pred_fallthru
      _
  $region6: #{block_forward.5} parent=0 // loop_footer
    %s21 = sadd.s32 1, %s17
  $region7: #{block_forward.5} parent=0 // loop_footer_branch
    %16 = sbr.rel target = $region3
  $region8: #{block_forward.5} parent=0 // loop_exit
    _

// kernel: block_forward.4
$region0: #{block_forward.4}
  #allocation0 [shape = 'u32[]', space=smem, size = 0x4, offset = 0x4, fixed_abs, tag = 'smem constant byte address 0x4 - core index']
  #allocation1 [shape = 'u32[72,128]{1,0:T(1,128)}', space=vmem, size = 0x9000, scoped, tag = 'internal scratch']
  #allocation2 [shape = 'f32[8,32]{1,0:T(8,128)}', space=vmem, size = 0x1000, scoped, tag = 'scratch operand']
  #allocation3 [shape = 'f32[8,32]{1,0:T(8,128)}', space=vmem, size = 0x1000, scoped, tag = 'scratch operand']
  %s0 = inlined_call_operand.vmem [shape: f32[2,8,32], index: 0, kind: input, shape index: {}]
  %s1 = inlined_call_operand.vmem [shape: f32[1,32], index: 1, kind: input, shape index: {}]
  %s2 = inlined_call_operand.vmem [shape: f32[1,32], index: 2, kind: input, shape index: {}]
  %s3 = inlined_call_operand.vmem [shape: f32[4,32,8], index: 3, kind: input, shape index: {}]
  %s4 = inlined_call_operand.vmem [shape: f32[4,32,8], index: 4, kind: input, shape index: {}]
  %s5 = inlined_call_operand.vmem [shape: f32[4,32,8], index: 5, kind: input, shape index: {}]
  %s6 = inlined_call_operand.vmem [shape: f32[4,8,32], index: 6, kind: input, shape index: {}]
  %s7 = inlined_call_operand.vmem [shape: f32[1,32], index: 7, kind: input, shape index: {}]
  %s8 = inlined_call_operand.vmem [shape: f32[2,8,32], index: 8, kind: output, shape index: {}]
  %s9 = sld [smem:[#allocation0]]
  $region73: #{block_forward.4} parent=0
    _
  %s11 = ssub.s32 1, %s9
  %s12 = scalar_select 0, %s11, %s9
  loop: start=0, step=1, limit=10
  $region2: #{block_forward.4} parent=0 // loop_pre_header
    _
  $region3: #{block_forward.4} parent=0 // loop_header
    %s14 = sphi 0, %s18
    %p15 = scmp.ge.s32.totalorder %s14, 10
    %s21 = sphi 0, %s33
    %s22 = sphi 0, %s29
    %s23 = sphi 0, %s21
    %s24 = sphi 0, %s22
    %s25 = sphi 0, %s23
    %s26 = sphi 0, %s24
    %s36 = sphi 0, %s38
    %s39 = sphi 0, %s36
    %s40 = sphi 0, %s39
    %s56 = sphi 0, %s40
    %s60 = sphi 0, %s60
    %s62 = sphi 0, %s60
    %s63 = sphi 0, %s62
    %s77 = sphi 0, %s63
    %s81 = sphi 0, %s81
    %s83 = sphi 0, %s81
    %s84 = sphi 0, %s83
    %s98 = sphi 0, %s84
    %s104 = sphi 0, %s106
    %s107 = sphi 0, %s104
    %s108 = sphi 0, %s107
    %s124 = sphi 0, %s108
    %s130 = sphi 0, %s132
    %s133 = sphi 0, %s130
    %s134 = sphi 0, %s133
    %s150 = sphi 0, %s134
    %s156 = sphi 0, %s158
    %s159 = sphi 0, %s156
    %s160 = sphi 0, %s159
    %s176 = sphi 0, %s160
    %s182 = sphi 0, %s184
    %s185 = sphi 0, %s182
    %s186 = sphi 0, %s185
    %s202 = sphi 0, %s186
    %s206 = sphi 0, %s206
    %s208 = sphi 0, %s206
    %s209 = sphi 0, %s208
    %s223 = sphi 0, %s209
    %s229 = sphi 0, %s231
    %s232 = sphi 0, %s229
    %s233 = sphi 0, %s232
    %s249 = sphi 0, %s233
  $region4: #{block_forward.4} parent=0 // loop_header_branch
    %17 = sbr.rel (%p15) target = $region8
  $region5: #{block_forward.4} parent=0 // loop_body
    %s19 = ssub.s32 %s14, 1
    %s20 = ssub.s32 %s14, 2
    %s27 = sadd.s32 1, %s22
    %p28 = scmp.ge.s32.totalorder %s27, 4
    %s29 = scalar_select %p28, 0, %s27
    %s30 = sadd.s32 1, %s21
    %s31 = scalar_select %p28, %s30, %s21
    %p32 = scmp.ge.s32.totalorder %s31, 2
    %s33 = scalar_select %p32, 0, %s31
    %s34 = ssub.s32 %s21, %s33
    %p35 = scmp.eq.s32.totalorder %s34, 0
    %s37 = sadd.s32 %s36, 1
    %s38 = scalar_select %p35, %s36, %s37
    %p41 = pneg %p35
    %p42 = scmp.eq.s32.totalorder %s14, 7
    %p43 = por %p41, %p42
    %p44 = scmp.ne.s32.totalorder %s36, %s39
    %p45 = scmp.eq.s32.totalorder %s14, 0
    %p46 = por %p44, %p45
    %p47 = scmp.ne.s32.totalorder %s36, %s39
    %p48 = scmp.eq.s32.totalorder %s19, 7
    %p49 = por %p47, %p48
    %p50 = scmp.ne.s32.totalorder %s39, %s40
    %p51 = scmp.eq.s32.totalorder %s19, 0
    %p52 = por %p50, %p51
    %p53 = scmp.ne.s32.totalorder %s39, %s40
    %p54 = scmp.eq.s32.totalorder %s20, 7
    %p55 = por %p53, %p54
    %p57 = scmp.ne.s32.totalorder %s40, %s56
    %p58 = scmp.eq.s32.totalorder %s20, 0
    %p59 = por %p57, %p58
    %s61 = sadd.s32 %s60, 1
    %p64 = scmp.eq.s32.totalorder %s14, 7
    %p65 = scmp.ne.s32.totalorder %s60, %s62
    %p66 = scmp.eq.s32.totalorder %s14, 0
    %p67 = por %p65, %p66
    %p68 = scmp.ne.s32.totalorder %s60, %s62
    %p69 = scmp.eq.s32.totalorder %s19, 7
    %p70 = por %p68, %p69
    %p71 = scmp.ne.s32.totalorder %s62, %s63
    %p72 = scmp.eq.s32.totalorder %s19, 0
    %p73 = por %p71, %p72
    %p74 = scmp.ne.s32.totalorder %s62, %s63
    %p75 = scmp.eq.s32.totalorder %s20, 7
    %p76 = por %p74, %p75
    %p78 = scmp.ne.s32.totalorder %s63, %s77
    %p79 = scmp.eq.s32.totalorder %s20, 0
    %p80 = por %p78, %p79
    %s82 = sadd.s32 %s81, 1
    %p85 = scmp.eq.s32.totalorder %s14, 7
    %p86 = scmp.ne.s32.totalorder %s81, %s83
    %p87 = scmp.eq.s32.totalorder %s14, 0
    %p88 = por %p86, %p87
    %p89 = scmp.ne.s32.totalorder %s81, %s83
    %p90 = scmp.eq.s32.totalorder %s19, 7
    %p91 = por %p89, %p90
    %p92 = scmp.ne.s32.totalorder %s83, %s84
    %p93 = scmp.eq.s32.totalorder %s19, 0
    %p94 = por %p92, %p93
    %p95 = scmp.ne.s32.totalorder %s83, %s84
    %p96 = scmp.eq.s32.totalorder %s20, 7
    %p97 = por %p95, %p96
    %p99 = scmp.ne.s32.totalorder %s84, %s98
    %p100 = scmp.eq.s32.totalorder %s20, 0
    %p101 = por %p99, %p100
    %s102 = ssub.s32 %s22, %s29
    %p103 = scmp.eq.s32.totalorder %s102, 0
    %s105 = sadd.s32 %s104, 1
    %s106 = scalar_select %p103, %s104, %s105
    %p109 = pneg %p103
    %p110 = scmp.eq.s32.totalorder %s14, 7
    %p111 = por %p109, %p110
    %p112 = scmp.ne.s32.totalorder %s104, %s107
    %p113 = scmp.eq.s32.totalorder %s14, 0
    %p114 = por %p112, %p113
    %p115 = scmp.ne.s32.totalorder %s104, %s107
    %p116 = scmp.eq.s32.totalorder %s19, 7
    %p117 = por %p115, %p116
    %p118 = scmp.ne.s32.totalorder %s107, %s108
    %p119 = scmp.eq.s32.totalorder %s19, 0
    %p120 = por %p118, %p119
    %p121 = scmp.ne.s32.totalorder %s107, %s108
    %p122 = scmp.eq.s32.totalorder %s20, 7
    %p123 = por %p121, %p122
    %p125 = scmp.ne.s32.totalorder %s108, %s124
    %p126 = scmp.eq.s32.totalorder %s20, 0
    %p127 = por %p125, %p126
    %s128 = ssub.s32 %s22, %s29
    %p129 = scmp.eq.s32.totalorder %s128, 0
    %s131 = sadd.s32 %s130, 1
    %s132 = scalar_select %p129, %s130, %s131
    %p135 = pneg %p129
    %p136 = scmp.eq.s32.totalorder %s14, 7
    %p137 = por %p135, %p136
    %p138 = scmp.ne.s32.totalorder %s130, %s133
    %p139 = scmp.eq.s32.totalorder %s14, 0
    %p140 = por %p138, %p139
    %p141 = scmp.ne.s32.totalorder %s130, %s133
    %p142 = scmp.eq.s32.totalorder %s19, 7
    %p143 = por %p141, %p142
    %p144 = scmp.ne.s32.totalorder %s133, %s134
    %p145 = scmp.eq.s32.totalorder %s19, 0
    %p146 = por %p144, %p145
    %p147 = scmp.ne.s32.totalorder %s133, %s134
    %p148 = scmp.eq.s32.totalorder %s20, 7
    %p149 = por %p147, %p148
    %p151 = scmp.ne.s32.totalorder %s134, %s150
    %p152 = scmp.eq.s32.totalorder %s20, 0
    %p153 = por %p151, %p152
    %s154 = ssub.s32 %s22, %s29
    %p155 = scmp.eq.s32.totalorder %s154, 0
    %s157 = sadd.s32 %s156, 1
    %s158 = scalar_select %p155, %s156, %s157
    %p161 = pneg %p155
    %p162 = scmp.eq.s32.totalorder %s14, 7
    %p163 = por %p161, %p162
    %p164 = scmp.ne.s32.totalorder %s156, %s159
    %p165 = scmp.eq.s32.totalorder %s14, 0
    %p166 = por %p164, %p165
    %p167 = scmp.ne.s32.totalorder %s156, %s159
    %p168 = scmp.eq.s32.totalorder %s19, 7
    %p169 = por %p167, %p168
    %p170 = scmp.ne.s32.totalorder %s159, %s160
    %p171 = scmp.eq.s32.totalorder %s19, 0
    %p172 = por %p170, %p171
    %p173 = scmp.ne.s32.totalorder %s159, %s160
    %p174 = scmp.eq.s32.totalorder %s20, 7
    %p175 = por %p173, %p174
    %p177 = scmp.ne.s32.totalorder %s160, %s176
    %p178 = scmp.eq.s32.totalorder %s20, 0
    %p179 = por %p177, %p178
    %s180 = ssub.s32 %s22, %s29
    %p181 = scmp.eq.s32.totalorder %s180, 0
    %s183 = sadd.s32 %s182, 1
    %s184 = scalar_select %p181, %s182, %s183
    %p187 = pneg %p181
    %p188 = scmp.eq.s32.totalorder %s14, 7
    %p189 = por %p187, %p188
    %p190 = scmp.ne.s32.totalorder %s182, %s185
    %p191 = scmp.eq.s32.totalorder %s14, 0
    %p192 = por %p190, %p191
    %p193 = scmp.ne.s32.totalorder %s182, %s185
    %p194 = scmp.eq.s32.totalorder %s19, 7
    %p195 = por %p193, %p194
    %p196 = scmp.ne.s32.totalorder %s185, %s186
    %p197 = scmp.eq.s32.totalorder %s19, 0
    %p198 = por %p196, %p197
    %p199 = scmp.ne.s32.totalorder %s185, %s186
    %p200 = scmp.eq.s32.totalorder %s20, 7
    %p201 = por %p199, %p200
    %p203 = scmp.ne.s32.totalorder %s186, %s202
    %p204 = scmp.eq.s32.totalorder %s20, 0
    %p205 = por %p203, %p204
    %s207 = sadd.s32 %s206, 1
    %p210 = scmp.eq.s32.totalorder %s14, 7
    %p211 = scmp.ne.s32.totalorder %s206, %s208
    %p212 = scmp.eq.s32.totalorder %s14, 0
    %p213 = por %p211, %p212
    %p214 = scmp.ne.s32.totalorder %s206, %s208
    %p215 = scmp.eq.s32.totalorder %s19, 7
    %p216 = por %p214, %p215
    %p217 = scmp.ne.s32.totalorder %s208, %s209
    %p218 = scmp.eq.s32.totalorder %s19, 0
    %p219 = por %p217, %p218
    %p220 = scmp.ne.s32.totalorder %s208, %s209
    %p221 = scmp.eq.s32.totalorder %s20, 7
    %p222 = por %p220, %p221
    %p224 = scmp.ne.s32.totalorder %s209, %s223
    %p225 = scmp.eq.s32.totalorder %s20, 0
    %p226 = por %p224, %p225
    %s227 = ssub.s32 %s21, %s33
    %p228 = scmp.eq.s32.totalorder %s227, 0
    %s230 = sadd.s32 %s229, 1
    %s231 = scalar_select %p228, %s229, %s230
    %p234 = pneg %p228
    %p235 = scmp.eq.s32.totalorder %s14, 7
    %p236 = por %p234, %p235
    %p237 = scmp.ne.s32.totalorder %s229, %s232
    %p238 = scmp.eq.s32.totalorder %s14, 0
    %p239 = por %p237, %p238
    %p240 = scmp.ne.s32.totalorder %s229, %s232
    %p241 = scmp.eq.s32.totalorder %s19, 7
    %p242 = por %p240, %p241
    %p243 = scmp.ne.s32.totalorder %s232, %s233
    %p244 = scmp.eq.s32.totalorder %s19, 0
    %p245 = por %p243, %p244
    %p246 = scmp.ne.s32.totalorder %s232, %s233
    %p247 = scmp.eq.s32.totalorder %s20, 7
    %p248 = por %p246, %p247
    %p250 = scmp.ne.s32.totalorder %s233, %s249
    %p251 = scmp.eq.s32.totalorder %s20, 0
    %p252 = por %p250, %p251
    %p253 = scmp.le.s32.totalorder 1, %s14
    %p254 = scmp.lt.s32.totalorder %s14, 9
    %p255 = pnand %p253, %p254
    %p256 = pneg %p255
    // Predicated region
    $region9: #{block_forward.4} parent=5 // pred_check
      _
    $region10: #{block_forward.4} parent=5 // pred_check_branch
      %258 = sbr.rel (%p255) target = $region12
    $region11: #{block_forward.4} parent=5 // pred_region
      %s259 = ssub.s32 %s14, 1
      // Predicated region
      $region13: #{block_forward.4} parent=11 // pred_check
        %p260 = pneg %p73
      $region14: #{block_forward.4} parent=11 // pred_check_branch
        %262 = sbr.rel (%p260) target = $region16
      $region15: #{block_forward.4} parent=11 // pred_region
        _
      $region16: #{block_forward.4} parent=11 // pred_fallthru
        _
      // Predicated region
      $region17: #{block_forward.4} parent=11 // pred_check
        %p263 = pneg %p94
      $region18: #{block_forward.4} parent=11 // pred_check_branch
        %265 = sbr.rel (%p263) target = $region20
      $region19: #{block_forward.4} parent=11 // pred_region
        _
      $region20: #{block_forward.4} parent=11 // pred_fallthru
        _
      // Predicated region
      $region21: #{block_forward.4} parent=11 // pred_check
        %p266 = pneg %p219
      $region22: #{block_forward.4} parent=11 // pred_check_branch
        %268 = sbr.rel (%p266) target = $region24
      $region23: #{block_forward.4} parent=11 // pred_region
        _
      $region24: #{block_forward.4} parent=11 // pred_fallthru
        _
    $region12: #{block_forward.4} parent=5 // pred_fallthru
      _
    %p269 = scmp.lt.s32.totalorder %s14, 8
    // Predicated region
    $region25: #{block_forward.4} parent=5 // pred_check
      %p270 = pneg %p269
    $region26: #{block_forward.4} parent=5 // pred_check_branch
      %272 = sbr.rel (%p270) target = $region28
    $region27: #{block_forward.4} parent=5 // pred_region
      // Predicated region
      $region29: #{block_forward.4} parent=27 // pred_check
        %p273 = pneg %p46
      $region30: #{block_forward.4} parent=27 // pred_check_branch
        %275 = sbr.rel (%p273) target = $region32
      $region31: #{block_forward.4} parent=27 // pred_region
        %p276 = scmp.lt.s32.totalorder %s21, 1
        %s277 = scalar_select %p276, %s21, 1
        %s278 = smul.addr %s277, 8
        %s279 = scalar_lea.vmem %s0, %s278
      $region32: #{block_forward.4} parent=27 // pred_fallthru
        _
      // Predicated region
      $region33: #{block_forward.4} parent=27 // pred_check
        %p280 = pneg %p114
      $region34: #{block_forward.4} parent=27 // pred_check_branch
        %282 = sbr.rel (%p280) target = $region36
      $region35: #{block_forward.4} parent=27 // pred_region
        %p283 = scmp.lt.s32.totalorder %s22, 3
        %s284 = scalar_select %p283, %s22, 3
        %s285 = smul.addr %s284, 4
        %s286 = smul.addr %s285, 8
        %s287 = scalar_lea.vmem %s3, %s286
      $region36: #{block_forward.4} parent=27 // pred_fallthru
        _
      // Predicated region
      $region37: #{block_forward.4} parent=27 // pred_check
        %p288 = pneg %p140
      $region38: #{block_forward.4} parent=27 // pred_check_branch
        %290 = sbr.rel (%p288) target = $region40
      $region39: #{block_forward.4} parent=27 // pred_region
        %p291 = scmp.lt.s32.totalorder %s22, 3
        %s292 = scalar_select %p291, %s22, 3
        %s293 = smul.addr %s292, 4
        %s294 = smul.addr %s293, 8
        %s295 = scalar_lea.vmem %s4, %s294
      $region40: #{block_forward.4} parent=27 // pred_fallthru
        _
      // Predicated region
      $region41: #{block_forward.4} parent=27 // pred_check
        %p296 = pneg %p166
      $region42: #{block_forward.4} parent=27 // pred_check_branch
        %298 = sbr.rel (%p296) target = $region44
      $region43: #{block_forward.4} parent=27 // pred_region
        %p299 = scmp.lt.s32.totalorder %s22, 3
        %s300 = scalar_select %p299, %s22, 3
        %s301 = smul.addr %s300, 4
        %s302 = smul.addr %s301, 8
        %s303 = scalar_lea.vmem %s5, %s302
      $region44: #{block_forward.4} parent=27 // pred_fallthru
        _
      // Predicated region
      $region45: #{block_forward.4} parent=27 // pred_check
        %p304 = pneg %p192
      $region46: #{block_forward.4} parent=27 // pred_check_branch
        %306 = sbr.rel (%p304) target = $region48
      $region47: #{block_forward.4} parent=27 // pred_region
        %p307 = scmp.lt.s32.totalorder %s22, 3
        %s308 = scalar_select %p307, %s22, 3
        %s309 = smul.addr %s308, 8
        %s310 = scalar_lea.vmem %s6, %s309
      $region48: #{block_forward.4} parent=27 // pred_fallthru
        _
    $region28: #{block_forward.4} parent=5 // pred_fallthru
      _
    %p311 = scmp.le.s32.totalorder 1, %s14
    %p312 = scmp.lt.s32.totalorder %s14, 9
    %p313 = pnand %p311, %p312
    %p314 = pneg %p313
    // Predicated region
    $region49: #{block_forward.4} parent=5 // pred_check
      _
    $region50: #{block_forward.4} parent=5 // pred_check_branch
      %316 = sbr.rel (%p313) target = $region52
    $region51: #{block_forward.4} parent=5 // pred_region
      %s317 = ssub.s32 %s14, 1
      %p318 = scmp.lt.s32.totalorder %s23, 1
      %s319 = scalar_select %p318, %s23, 1
      %s320 = smul.addr %s319, 8
      %s321 = scalar_lea.vmem %s0, %s320
      %p322 = pneg %p52
      %p323 = pneg %p49
      %p324 = pneg %p73
      %p325 = pneg %p70
      %p326 = pneg %p94
      %p327 = pneg %p91
      %p328 = scmp.lt.s32.totalorder %s24, 3
      %s329 = scalar_select %p328, %s24, 3
      %s330 = smul.addr %s329, 4
      %s331 = smul.addr %s330, 8
      %s332 = scalar_lea.vmem %s3, %s331
      %p333 = pneg %p120
      %p334 = pneg %p117
      %p335 = scmp.lt.s32.totalorder %s24, 3
      %s336 = scalar_select %p335, %s24, 3
      %s337 = smul.addr %s336, 4
      %s338 = smul.addr %s337, 8
      %s339 = scalar_lea.vmem %s4, %s338
      %p340 = pneg %p146
      %p341 = pneg %p143
      %p342 = scmp.lt.s32.totalorder %s24, 3
      %s343 = scalar_select %p342, %s24, 3
      %s344 = smul.addr %s343, 4
      %s345 = smul.addr %s344, 8
      %s346 = scalar_lea.vmem %s5, %s345
      %p347 = pneg %p172
      %p348 = pneg %p169
      %p349 = scmp.lt.s32.totalorder %s24, 3
      %s350 = scalar_select %p349, %s24, 3
      %s351 = smul.addr %s350, 8
      %s352 = scalar_lea.vmem %s6, %s351
      %p353 = pneg %p198
      %p354 = pneg %p195
      %p355 = pneg %p219
      %p356 = pneg %p216
      %p357 = pneg %p245
      %p358 = pneg %p242
      %p359 = scmp.lt.s32.totalorder %s23, 1
      %s360 = scalar_select %p359, %s23, 1
      %s361 = smul.addr %s360, 8
      %s362 = scalar_lea.vmem %s8, %s361
      %p363 = scmp.lt.s32.totalorder %s23, 1
      %s364 = scalar_select %p363, %s23, 1
      %s365 = smul.addr %s364, 8
      %s366 = scalar_lea.vmem %s0, %s365
      %p367 = scmp.lt.s32.totalorder %s24, 3
      %s368 = scalar_select %p367, %s24, 3
      %s369 = smul.addr %s368, 4
      %s370 = smul.addr %s369, 8
      %s371 = scalar_lea.vmem %s3, %s370
      %p372 = scmp.lt.s32.totalorder %s24, 3
      %s373 = scalar_select %p372, %s24, 3
      %s374 = smul.addr %s373, 4
      %s375 = smul.addr %s374, 8
      %s376 = scalar_lea.vmem %s4, %s375
      %p377 = scmp.lt.s32.totalorder %s24, 3
      %s378 = scalar_select %p377, %s24, 3
      %s379 = smul.addr %s378, 4
      %s380 = smul.addr %s379, 8
      %s381 = scalar_lea.vmem %s5, %s380
      %p382 = scmp.lt.s32.totalorder %s24, 3
      %s383 = scalar_select %p382, %s24, 3
      %s384 = smul.addr %s383, 8
      %s385 = scalar_lea.vmem %s6, %s384
      %p386 = scmp.lt.s32.totalorder %s23, 1
      %s387 = scalar_select %p386, %s23, 1
      %s388 = smul.addr %s387, 8
      %s389 = scalar_lea.vmem %s8, %s388
      %p390 = scmp.eq.s32.totalorder %s24, 0
      // Predicated region
      $region53: #{block_forward.4} parent=51 // pred_check
        %p391 = pneg %p390
      $region54: #{block_forward.4} parent=51 // pred_check_branch
        %393 = sbr.rel (%p391) target = $region56
      $region55: #{block_forward.4} parent=51 // pred_region
        %v394 = vld [vmem:[%s366] sm:$0xff]
        %v395 = vld [vmem:[%s1] sm:$0x1]
        %v396 = vld [vmem:[%s2] sm:$0x1]
        %vm397 = vcmask 261120
        %v398 = vsel %vm397, %v394, 0.0
        %399 = vadd.xlane.f32.xlu0 %v398
        %v400 = vpop.xlane.xlu0 %399
        %v401 = vrcp.pop 32.0
        %v402 = vmul.f32 32.0, %v401
        %v403 = vsub.f32 1.0, %v402
        %v404 = vmul.f32 %v401, %v403
        %v405 = vadd.f32 %v401, %v404
        %vm406 = vweird.f32 %v401
        %v407 = vsel %vm406, %v401, %v405
        %v408 = vmul.f32 %v400, %v407
        %v409 = vsub.f32 %v394, %v408
        %v410 = vmul.f32 %v409, %v409
        %v411 = vsel %vm397, %v410, 0.0
        %412 = vadd.xlane.f32.xlu0 %v411
        %v413 = vpop.xlane.xlu0 %412
        %v414 = vmul.f32 %v413, %v407
        %v415 = vadd.f32 %v414, 1e-05
        %v416 = vrsqrt.pop %v415
        %v417 = vmul.f32 %v416, %v415
        %v418 = vmul.f32 %v417, %v416
        %v419 = vmul.f32 0.5, %v418
        %v420 = vsub.f32 1.5, %v419
        %v421 = vmul.f32 %v416, %v420
        %vm422 = vweird.f32 %v415
        %vm423 = vweird.f32 %v416
        %vm424 = vmor %vm422, %vm423
        %v425 = vsel %vm424, %v416, %v421
        %v426 = vmul.f32 %v409, %v425
        %v428 = vperm.slane %v395, 0
        %v430 = vmul.f32 %v426, %v428
        %v432 = vperm.slane %v396, 0
        %v434 = vadd.f32 %v430, %v432
        %435 = vst.msk [vmem:[#allocation2] sm:$0xff] %vm397, %v434
        %v436 = vld [vmem:[%s7] sm:$0x1]
        %v438 = vperm.slane %v436, 0
        %v440 = vadd.f32 %v394, %v438
        %441 = vst.msk [vmem:[#allocation3] sm:$0xff] %vm397, %v440
      $region56: #{block_forward.4} parent=51 // pred_fallthru
        _
      %v442 = vld [vmem:[#allocation2] sm:$0xff]
      %v443 = vld [vmem:[%s371] sm:$0xff]
      %v444 = vld [vmem:[%s371 + $0x8] sm:$0xff]
      %v445 = vld [vmem:[%s371 + $0x10] sm:$0xff]
      %v446 = vld [vmem:[%s371 + $0x18] sm:$0xff]
      %vm447 = vcmask 261120
      %v449 = vsel %vm447, %v442, 0
      %451 = vmatpush.msra.mxu0 0.0
      %452 = vmatpush.msra.mxu0 0.0
      %453 = vmatpush.msra.mxu0 0.0
      %454 = vmatpush.msra.mxu0 0.0
      %455 = vmatpush.msra.mxu0 0.0
      %456 = vmatpush.msra.mxu0 0.0
      %457 = vmatpush.msra.mxu0 0.0
      %458 = vmatpush.msra.mxu0 0.0
      %459 = vmatpush.msra.mxu0 0.0
      %460 = vmatpush.msra.mxu0 0.0
      %461 = vmatpush.msra.mxu0 0.0
      %462 = vmatpush.msra.mxu0 0.0
      %463 = vmatpush.msra.mxu0 %v446
      %464 = vmatpush.msra.mxu0 %v445
      %465 = vmatpush.msra.mxu0 %v444
      %466 = vmatpush.msra.mxu0 %v443
      %467 = vmatmul.f32.gmra.mxu0 %v449
      %v468 = vpop.f32.mrf.mxu0
      %v469 = vadd.f32 0.0, %v468
      %470 = vdwg.mxu0
      %v471 = vld [vmem:[%s376] sm:$0xff]
      %v472 = vld [vmem:[%s376 + $0x8] sm:$0xff]
      %v473 = vld [vmem:[%s376 + $0x10] sm:$0xff]
      %v474 = vld [vmem:[%s376 + $0x18] sm:$0xff]
      %475 = vmatpush.msra.mxu0 0.0
      %476 = vmatpush.msra.mxu0 0.0
      %477 = vmatpush.msra.mxu0 0.0
      %478 = vmatpush.msra.mxu0 0.0
      %479 = vmatpush.msra.mxu0 0.0
      %480 = vmatpush.msra.mxu0 0.0
      %481 = vmatpush.msra.mxu0 0.0
      %482 = vmatpush.msra.mxu0 0.0
      %483 = vmatpush.msra.mxu0 0.0
      %484 = vmatpush.msra.mxu0 0.0
      %485 = vmatpush.msra.mxu0 0.0
      %486 = vmatpush.msra.mxu0 0.0
      %487 = vmatpush.msra.mxu0 %v474
      %488 = vmatpush.msra.mxu0 %v473
      %489 = vmatpush.msra.mxu0 %v472
      %490 = vmatpush.msra.mxu0 %v471
      %491 = vmatmul.f32.gmra.mxu0 %v449
      %v492 = vpop.f32.mrf.mxu0
      %v493 = vadd.f32 0.0, %v492
      %494 = vdwg.mxu0
      %v495 = vld [vmem:[%s381] sm:$0xff]
      %v496 = vld [vmem:[%s381 + $0x8] sm:$0xff]
      %v497 = vld [vmem:[%s381 + $0x10] sm:$0xff]
      %v498 = vld [vmem:[%s381 + $0x18] sm:$0xff]
      %499 = vmatpush.msra.mxu0 0.0
      %500 = vmatpush.msra.mxu0 0.0
      %501 = vmatpush.msra.mxu0 0.0
      %502 = vmatpush.msra.mxu0 0.0
      %503 = vmatpush.msra.mxu0 0.0
      %504 = vmatpush.msra.mxu0 0.0
      %505 = vmatpush.msra.mxu0 0.0
      %506 = vmatpush.msra.mxu0 0.0
      %507 = vmatpush.msra.mxu0 0.0
      %508 = vmatpush.msra.mxu0 0.0
      %509 = vmatpush.msra.mxu0 0.0
      %510 = vmatpush.msra.mxu0 0.0
      %511 = vmatpush.msra.mxu0 %v498
      %512 = vmatpush.msra.mxu0 %v497
      %513 = vmatpush.msra.mxu0 %v496
      %514 = vmatpush.msra.mxu0 %v495
      %515 = vmatmul.f32.gmra.mxu0 %v449
      %v516 = vpop.f32.mrf.mxu0
      %v517 = vadd.f32 0.0, %v516
      %518 = vdwg.mxu0
      %vm519 = vcmask 64512
      %v521 = vsel %vm519, %v469, 0
      %v524 = vsel %vm519, %v493, 0
      %526 = vmatpush.xpose.msra.mxu0 0.0
      %527 = vmatpush.xpose.msra.mxu0 0.0
      %528 = vmatpush.xpose.msra.mxu0 0.0
      %529 = vmatpush.xpose.msra.mxu0 0.0
      %530 = vmatpush.xpose.msra.mxu0 0.0
      %531 = vmatpush.xpose.msra.mxu0 0.0
      %532 = vmatpush.xpose.msra.mxu0 0.0
      %533 = vmatpush.xpose.msra.mxu0 0.0
      %534 = vmatpush.xpose.msra.mxu0 0.0
      %535 = vmatpush.xpose.msra.mxu0 0.0
      %536 = vmatpush.xpose.msra.mxu0 0.0
      %537 = vmatpush.xpose.msra.mxu0 0.0
      %538 = vmatpush.xpose.msra.mxu0 0.0
      %539 = vmatpush.xpose.msra.mxu0 0.0
      %540 = vmatpush.xpose.msra.mxu0 0.0
      %541 = vmatpush.xpose.msra.mxu0 %v524
      %542 = vmatmul.f32.gmra.mxu0 %v521
      %v543 = vpop.f32.mrf.mxu0
      %v544 = vadd.f32 0.0, %v543
      %545 = vdwg.mxu0
      %v546 = vsel %vm519, %v544, -inf
      %547 = vmax.xlane.f32.xlu0 %v546
      %v548 = vpop.xlane.xlu0 %547
      %v549 = vsub.f32 %v544, %v548
      %v550 = vmul.f32 %v549, 1.442695
      %v551 = vpow.pop %v550
      %v552 = vsel %vm519, %v551, 0.0
      %553 = vadd.xlane.f32.xlu0 %v552
      %v554 = vpop.xlane.xlu0 %553
      %v555 = vrcp.pop %v554
      %v556 = vmul.f32 %v551, %v555
      %v558 = vsel %vm519, %v556, 0
      %560 = vmatpush.msra.mxu0 0.0
      %561 = vmatpush.msra.mxu0 0.0
      %562 = vmatpush.msra.mxu0 0.0
      %563 = vmatpush.msra.mxu0 0.0
      %564 = vmatpush.msra.mxu0 0.0
      %565 = vmatpush.msra.mxu0 0.0
      %566 = vmatpush.msra.mxu0 0.0
      %567 = vmatpush.msra.mxu0 0.0
      %568 = vmatpush.msra.mxu0 0.0
      %569 = vmatpush.msra.mxu0 0.0
      %570 = vmatpush.msra.mxu0 0.0
      %571 = vmatpush.msra.mxu0 0.0
      %572 = vmatpush.msra.mxu0 0.0
      %573 = vmatpush.msra.mxu0 0.0
      %574 = vmatpush.msra.mxu0 0.0
      %575 = vmatpush.msra.mxu0 %v517
      %576 = vmatmul.f32.gmra.mxu0 %v558
      %v577 = vpop.f32.mrf.mxu0
      %v578 = vadd.f32 0.0, %v577
      %579 = vdwg.mxu0
      %v580 = vld [vmem:[#allocation3] sm:$0xff]
      %v581 = vld [vmem:[%s385] sm:$0xff]
      %v583 = vsel %vm519, %v578, 0
      %585 = vmatpush.msra.mxu0 0.0
      %586 = vmatpush.msra.mxu0 0.0
      %587 = vmatpush.msra.mxu0 0.0
      %588 = vmatpush.msra.mxu0 0.0
      %589 = vmatpush.msra.mxu0 0.0
      %590 = vmatpush.msra.mxu0 0.0
      %591 = vmatpush.msra.mxu0 0.0
      %592 = vmatpush.msra.mxu0 0.0
      %593 = vmatpush.msra.mxu0 0.0
      %594 = vmatpush.msra.mxu0 0.0
      %595 = vmatpush.msra.mxu0 0.0
      %596 = vmatpush.msra.mxu0 0.0
      %597 = vmatpush.msra.mxu0 0.0
      %598 = vmatpush.msra.mxu0 0.0
      %599 = vmatpush.msra.mxu0 0.0
      %600 = vmatpush.msra.mxu0 %v581
      %601 = vmatmul.f32.gmra.mxu0 %v583
      %v602 = vpop.f32.mrf.mxu0
      %v603 = vadd.f32 0.0, %v602
      %604 = vdwg.mxu0
      %v605 = vadd.f32 %v580, %v603
      %606 = vst.msk [vmem:[#allocation3] sm:$0xff] %vm447, %v605
      %p607 = scmp.eq.s32.totalorder %s24, 3
      // Predicated region
      $region57: #{block_forward.4} parent=51 // pred_check
        %p608 = pneg %p607
      $region58: #{block_forward.4} parent=51 // pred_check_branch
        %610 = sbr.rel (%p608) target = $region60
      $region59: #{block_forward.4} parent=51 // pred_region
        %v611 = vld [vmem:[#allocation3] sm:$0xff]
        %612 = vst.msk [vmem:[%s389] sm:$0xff] %vm447, %v611
      $region60: #{block_forward.4} parent=51 // pred_fallthru
        _
      %p613 = scmp.lt.s32.totalorder %s23, 1
      %s614 = scalar_select %p613, %s23, 1
      %s615 = smul.addr %s614, 8
      %s616 = scalar_lea.vmem %s8, %s615
      // Predicated region
      $region61: #{block_forward.4} parent=51 // pred_check
        %p617 = pneg %p242
      $region62: #{block_forward.4} parent=51 // pred_check_branch
        %619 = sbr.rel (%p617) target = $region64
      $region63: #{block_forward.4} parent=51 // pred_region
        _
      $region64: #{block_forward.4} parent=51 // pred_fallthru
        _
    $region52: #{block_forward.4} parent=5 // pred_fallthru
      _
    %p620 = scmp.le.s32.totalorder 2, %s14
    // Predicated region
    $region65: #{block_forward.4} parent=5 // pred_check
      %p621 = pneg %p620
    $region66: #{block_forward.4} parent=5 // pred_check_branch
      %623 = sbr.rel (%p621) target = $region68
    $region67: #{block_forward.4} parent=5 // pred_region
      %s624 = ssub.s32 %s14, 2
      // Predicated region
      $region69: #{block_forward.4} parent=67 // pred_check
        %p625 = pneg %p248
      $region70: #{block_forward.4} parent=67 // pred_check_branch
        %627 = sbr.rel (%p625) target = $region72
      $region71: #{block_forward.4} parent=67 // pred_region
        %p628 = scmp.lt.s32.totalorder %s25, 1
        %s629 = scalar_select %p628, %s25, 1
        %s630 = smul.addr %s629, 8
        %s631 = scalar_lea.vmem %s8, %s630
      $region72: #{block_forward.4} parent=67 // pred_fallthru
        _
    $region68: #{block_forward.4} parent=5 // pred_fallthru
      _
  $region6: #{block_forward.4} parent=0 // loop_footer
    %s18 = sadd.s32 1, %s14
  $region7: #{block_forward.4} parent=0 // loop_footer_branch
    %13 = sbr.rel target = $region3
  $region8: #{block_forward.4} parent=0 // loop_exit
    _

</llo_original>
